<compile_context>
chip_gen: v7x
topology: tpu7x:2x2x1
jax: 0.10.0
libtpu: 0.0.40
codegen_flags: <defaults>
</compile_context>

<pallas_src>
import functools

import jax
import jax.numpy as jnp
from jax.experimental import pallas as pl
from jax.experimental.pallas import tpu as pltpu


def _pad8(n):
    return -(-n // 8) * 8


def tpa_kernel(
    x_ref,        # (B*T, D)  batch-major flattened input
    lstm_ref,     # (pad8(D)+pad8(Hd)+1, 4Hd): [Wih ; Whh ; bias], gate order i,f,o,g
    conv_ref,     # (pad8(T+1)+F, max(F,T+1)): [convw (T,F); convb (1,F); convw_ft|convb (F,T+1)]
    w1_ref,       # (pad8(Hd)+1, F): [w1^T ; b1]
    outw_ref,     # (pad8(Hd)+pad8(F)+1, O): [W_hf ; W_vf ; b_out]  (linear2·fc folded)
    out_ref,      # (B, O)
    *,
    seq_len, batch, hidden, input_size, filt,
):
    T, B, Hd, D, F = seq_len, batch, hidden, input_size, filt
    G = 4 * Hd
    f32 = jnp.float32

    # ---- fused LSTM parameters (sublane-aligned static slices of one slab) ----
    wih = lstm_ref[0:D, :]                                               # (D, 4Hd)
    whh = lstm_ref[_pad8(D):_pad8(D) + Hd, :]                            # (Hd, 4Hd)
    bias = lstm_ref[_pad8(D) + _pad8(Hd):_pad8(D) + _pad8(Hd) + 1, :]    # (1, 4Hd)

    # ---- hoisted, fused input projection over ALL timesteps ----
    x = x_ref[...]                                                       # (B*T, D)
    gx = jnp.dot(x, wih, preferred_element_type=f32) + bias              # (B*T, 4Hd)
    gx3 = jnp.reshape(gx, (B, T, G))                                     # layout-preserving split

    # ---- statically unrolled recurrence: ONE MXU round trip per step ----
    h = None
    c = None
    h_list = []
    for t in range(T):
        pre = gx3[:, t, :]                                               # (B, 4Hd) sublane gather
        if t > 0:
            pre = pre + jnp.dot(h, whh, preferred_element_type=f32)
        sig = jax.nn.sigmoid(pre[:, 0:3 * Hd])                           # i|f|o gates
        g_g = jnp.tanh(pre[:, 3 * Hd:4 * Hd])                            # g gate
        i_g = sig[:, 0 * Hd:1 * Hd]
        f_g = sig[:, 1 * Hd:2 * Hd]
        o_g = sig[:, 2 * Hd:3 * Hd]
        if t == 0:
            c = i_g * g_g                                                # c_{-1} = 0
        else:
            c = f_g * c + i_g * g_g
        h = o_g * jnp.tanh(c)
        h_list.append(h)                                                 # stays in vregs

    h_now = h                                                            # (B, Hd) == hn

    # ---- attention epilogue; conv output H (B,F,Hd) is never materialized ----
    w1w = w1_ref[0:Hd, :]                                                # (Hd, F)
    b1 = w1_ref[_pad8(Hd):_pad8(Hd) + 1, :]                              # (1, F)
    w_h = jnp.dot(h_now, w1w, preferred_element_type=f32) + b1           # (B, F)

    conv_all = conv_ref[...]
    convw_tf = conv_all[0:T, 0:F]                                        # (T, F)
    convb = conv_all[T:T + 1, 0:F]                                       # (1, F)
    conv_mat = conv_all[_pad8(T + 1):_pad8(T + 1) + F, :]                # (F, >=T+1); col T = convb
    # cw[:, t] = <w_h, convw[t,:]>,   cw[:, T] = <w_h, convb>
    cw = jnp.dot(w_h, conv_mat, preferred_element_type=f32)              # (B, >=T+1)

    # score[b,h] = sum_t cw[b,t] * h_t[b,h] + cw[b,T]
    score = jnp.zeros((B, Hd), f32)
    for t in range(T):
        score = score + cw[:, t:t + 1] * h_list[t]
    score = score + cw[:, T:T + 1]

    # nn.Softmax() on a 2-D tensor defaults to dim=1 (hidden axis)
    score = score - jnp.max(score, axis=1, keepdims=True)
    e = jnp.exp(score)
    a = e * pl.reciprocal(jnp.sum(e, axis=1, keepdims=True), approx=True)  # (B, Hd)

    # v[b,f] = sum_t convw[t,f] * <a[b,:], h_t[b,:]> + convb[f]   (softmax sums to 1)
    v = jnp.zeros((B, F), f32)
    for t in range(T):
        s_t = jnp.sum(a * h_list[t], axis=1, keepdims=True)             # (B, 1)
        v = v + s_t * convw_tf[t:t + 1, :]
    v = v + convb                                                        # (B, F)

    # (linear2 then fc_layer) folded host-side: out = h_now@W_hf + v@W_vf + b_out
    w_hf = outw_ref[0:Hd, :]                                             # (Hd, O)
    w_vf = outw_ref[_pad8(Hd):_pad8(Hd) + F, :]                          # (F, O)
    b_out = outw_ref[_pad8(Hd) + _pad8(F):_pad8(Hd) + _pad8(F) + 1, :]   # (1, O)
    out = (jnp.dot(h_now, w_hf, preferred_element_type=f32)
           + jnp.dot(v, w_vf, preferred_element_type=f32)
           + b_out)
    out_ref[...] = out.astype(out_ref.dtype)


def tpa_forward(x_btd, kp):
    """x_btd: (B, T, D) like the PyTorch module (batch_first=True)."""
    B, T, D = x_btd.shape
    G = kp["lstm"].shape[1]
    Hd = G // 4
    F = kp["w1"].shape[1]
    O = kp["out"].shape[1]

    x_flat = x_btd.reshape(B * T, D)     # batch-first flatten: free, no transpose launch

    kernel = functools.partial(
        tpa_kernel, seq_len=T, batch=B, hidden=Hd, input_size=D, filt=F)
    vmem = pl.BlockSpec(memory_space=pltpu.MemorySpace.VMEM)
    return pl.pallas_call(
        kernel,
        out_shape=jax.ShapeDtypeStruct((B, O), jnp.float32),
        in_specs=[vmem] * 5,
        out_specs=vmem,
    )(x_flat, kp["lstm"], kp["conv"], kp["w1"], kp["out"])


def init_raw_params(key, seq_len, input_size, hidden, output_size, filter_num):
    """Deterministic synthetic parameters, PyTorch-convention shapes."""
    ks = jax.random.split(key, 12)
    s = 0.1
    return {
        "w_ih": jax.random.normal(ks[0], (4 * hidden, input_size), jnp.float32) * s,
        "w_hh": jax.random.normal(ks[1], (4 * hidden, hidden), jnp.float32) * s,
        "b_ih": jax.random.normal(ks[2], (4 * hidden,), jnp.float32) * s,
        "b_hh": jax.random.normal(ks[3], (4 * hidden,), jnp.float32) * s,
        "conv_w": jax.random.normal(ks[4], (filter_num, 1, seq_len, 1), jnp.float32) * s,
        "conv_b": jax.random.normal(ks[5], (filter_num,), jnp.float32) * s,
        "w1": jax.random.normal(ks[6], (filter_num, hidden), jnp.float32) * s,
        "b1": jax.random.normal(ks[7], (filter_num,), jnp.float32) * s,
        "w2": jax.random.normal(ks[8], (hidden, filter_num + hidden), jnp.float32) * s,
        "b2": jax.random.normal(ks[9], (hidden,), jnp.float32) * s,
        "wfc": jax.random.normal(ks[10], (output_size, hidden), jnp.float32) * s,
        "bfc": jax.random.normal(ks[11], (output_size,), jnp.float32) * s,
    }


def to_kernel_params(p, seq_len, input_size, hidden, output_size, filter_num):
    """Pack/pre-fold weights into 4 sublane-aligned VMEM slabs."""
    T, D, Hd, O, F = seq_len, input_size, hidden, output_size, filter_num
    G = 4 * Hd

    # --- LSTM slab: fused gates in order (i, f, o, g); PyTorch row order is (i, f, g, o) ---
    order = (0, 1, 3, 2)

    def fuse(mat):                      # (4Hd, in) -> (in, 4Hd), column blocks [i|f|o|g]
        return jnp.concatenate([mat[k * Hd:(k + 1) * Hd, :].T for k in order], axis=1)

    wih_f = fuse(p["w_ih"])             # (D, 4Hd)
    whh_f = fuse(p["w_hh"])             # (Hd, 4Hd)
    b_sum = p["b_ih"] + p["b_hh"]
    b_f = jnp.concatenate([b_sum[k * Hd:(k + 1) * Hd] for k in order])   # (4Hd,)

    lstm_slab = jnp.zeros((_pad8(D) + _pad8(Hd) + 1, G), jnp.float32)
    lstm_slab = lstm_slab.at[0:D, :].set(wih_f)
    lstm_slab = lstm_slab.at[_pad8(D):_pad8(D) + Hd, :].set(whh_f)
    lstm_slab = lstm_slab.at[_pad8(D) + _pad8(Hd), :].set(b_f)

    # --- conv slab: convw (T,F), convb (1,F), and [convw_ft | convb] (F,T+1) ---
    convw_tf = p["conv_w"].reshape(F, T).T                               # (T, F)
    convb = p["conv_b"]                                                  # (F,)
    CW = max(F, T + 1)
    conv_slab = jnp.zeros((_pad8(T + 1) + F, CW), jnp.float32)
    conv_slab = conv_slab.at[0:T, 0:F].set(convw_tf)
    conv_slab = conv_slab.at[T, 0:F].set(convb)
    conv_mat = jnp.concatenate([convw_tf.T, convb[:, None]], axis=1)     # (F, T+1)
    conv_slab = conv_slab.at[_pad8(T + 1):_pad8(T + 1) + F, 0:T + 1].set(conv_mat)

    # --- linear1 slab ---
    w1_slab = jnp.zeros((_pad8(Hd) + 1, F), jnp.float32)
    w1_slab = w1_slab.at[0:Hd, :].set(p["w1"].T)                         # (Hd, F)
    w1_slab = w1_slab.at[_pad8(Hd), :].set(p["b1"])

    # --- output slab: linear2 folded into fc_layer (no nonlinearity between them) ---
    wfc_t = p["wfc"].T                                                   # (Hd, O)
    w_hf = p["w2"][:, :Hd].T @ wfc_t                                     # (Hd, O)
    w_vf = p["w2"][:, Hd:].T @ wfc_t                                     # (F, O)
    b_out = p["b2"] @ wfc_t + p["bfc"]                                   # (O,)
    out_slab = jnp.zeros((_pad8(Hd) + _pad8(F) + 1, O), jnp.float32)
    out_slab = out_slab.at[0:Hd, :].set(w_hf)
    out_slab = out_slab.at[_pad8(Hd):_pad8(Hd) + F, :].set(w_vf)
    out_slab = out_slab.at[_pad8(Hd) + _pad8(F), :].set(b_out)

    return {"lstm": lstm_slab, "conv": conv_slab, "w1": w1_slab, "out": out_slab}


def ref_forward(x_btd, p, hidden):
    """Pure-JAX reference mirroring the PyTorch module exactly."""
    B, T, D = x_btd.shape
    h = jnp.zeros((B, hidden), jnp.float32)
    c = jnp.zeros((B, hidden), jnp.float32)
    outs = []
    for t in range(T):
        gates = x_btd[:, t] @ p["w_ih"].T + h @ p["w_hh"].T + p["b_ih"] + p["b_hh"]
        i_g = jax.nn.sigmoid(gates[:, 0 * hidden:1 * hidden])
        f_g = jax.nn.sigmoid(gates[:, 1 * hidden:2 * hidden])
        g_g = jnp.tanh(gates[:, 2 * hidden:3 * hidden])
        o_g = jax.nn.sigmoid(gates[:, 3 * hidden:4 * hidden])
        c = f_g * c + i_g * g_g
        h = o_g * jnp.tanh(c)
        outs.append(h)
    seq = jnp.stack(outs, axis=1)                                # (B, T, Hd)
    conv_w = p["conv_w"][:, 0, :, 0]                             # (F, T)
    Hmat = jnp.einsum("bth,ft->bhf", seq, conv_w) + p["conv_b"]  # (B, Hd, F)
    w_h = h @ p["w1"].T + p["b1"]                                # (B, F)
    score = jnp.sum(Hmat * w_h[:, None, :], axis=2)              # (B, Hd)
    a = jax.nn.softmax(score, axis=1)
    v = jnp.sum(a[:, :, None] * Hmat, axis=1)                    # (B, F)
    h_v = jnp.concatenate([h, v], axis=1)
    h_prime = h_v @ p["w2"].T + p["b2"]
    return h_prime @ p["wfc"].T + p["bfc"]


if __name__ == "__main__":
    seq_len, input_size, hidden, output_size, filter_num = 8, 4, 32, 4, 16
    batch = 2

    key = jax.random.PRNGKey(0)
    pkey, xkey = jax.random.split(key)
    raw = init_raw_params(pkey, seq_len, input_size, hidden, output_size, filter_num)
    kp = to_kernel_params(raw, seq_len, input_size, hidden, output_size, filter_num)

    x = jax.random.normal(xkey, (batch, seq_len, input_size), jnp.float32)

    out = tpa_forward(x, kp)
    out = jax.block_until_ready(out)

    ref = ref_forward(x, raw, hidden)
    assert out.shape == (batch, output_size), out.shape
    assert bool(jnp.all(jnp.isfinite(out)))
    max_err = float(jnp.max(jnp.abs(out - ref)))
    assert max_err < 5e-2, f"mismatch vs reference: {max_err}"

    print("KERNEL_OK")
</pallas_src>

<mosaic_0001>
module attributes {stable_mosaic.version = 11 : i64} {
  func.func @tpa_kernel(%arg0: memref<16x4xf32, #tpu.memory_space<vmem>>, %arg1: memref<41x128xf32, #tpu.memory_space<vmem>>, %arg2: memref<32x16xf32, #tpu.memory_space<vmem>>, %arg3: memref<33x16xf32, #tpu.memory_space<vmem>>, %arg4: memref<49x4xf32, #tpu.memory_space<vmem>>, %arg5: memref<2x4xf32, #tpu.memory_space<vmem>>) attributes {dimension_semantics = [], scalar_prefetch = 0 : i64, scratch_operands = 0 : i64, tpu.core_type = #tpu.core_type<tc>} {
    %c0 = arith.constant 0 : index
    %c0_0 = arith.constant 0 : index
    %0 = vector.load %arg1[%c0, %c0_0] : memref<41x128xf32, #tpu.memory_space<vmem>>, vector<4x128xf32>
    %c8 = arith.constant 8 : index
    %c0_1 = arith.constant 0 : index
    %1 = vector.load %arg1[%c8, %c0_1] : memref<41x128xf32, #tpu.memory_space<vmem>>, vector<32x128xf32>
    %c40 = arith.constant 40 : index
    %c0_2 = arith.constant 0 : index
    %2 = vector.load %arg1[%c40, %c0_2] : memref<41x128xf32, #tpu.memory_space<vmem>>, vector<1x128xf32>
    %c0_3 = arith.constant 0 : index
    %c0_4 = arith.constant 0 : index
    %3 = vector.load %arg0[%c0_3, %c0_4] : memref<16x4xf32, #tpu.memory_space<vmem>>, vector<16x4xf32>
    %cst = arith.constant dense<0.000000e+00> : vector<16x128xf32>
    %4 = tpu.matmul %3, %0, %cst {dimension_numbers = #tpu.dot_dimension_numbers<[1], [0], [0], [1], [0, 0, 1, 1], [], []>} : vector<16x4xf32>, vector<4x128xf32>, vector<16x128xf32> -> vector<16x128xf32>
    %5 = vector.broadcast %2 : vector<1x128xf32> to vector<16x128xf32>
    %6 = arith.addf %4, %5 : vector<16x128xf32>
    %7 = vector.shape_cast %6 : vector<16x128xf32> to vector<2x8x128xf32>
    %8 = vector.extract_strided_slice %7 {offsets = [0, 0, 0], sizes = [2, 1, 128], strides = [1, 1, 1]} : vector<2x8x128xf32> to vector<2x1x128xf32>
    %9 = vector.shape_cast %8 : vector<2x1x128xf32> to vector<2x128xf32>
    %10 = vector.extract_strided_slice %9 {offsets = [0, 0], sizes = [2, 96], strides = [1, 1]} : vector<2x128xf32> to vector<2x96xf32>
    %11 = arith.negf %10 : vector<2x96xf32>
    %12 = math.exp %11 : vector<2x96xf32>
    %cst_5 = arith.constant 1.000000e+00 : f32
    %13 = vector.broadcast %cst_5 : f32 to vector<2x96xf32>
    %14 = arith.addf %13, %12 : vector<2x96xf32>
    %15 = arith.divf %13, %14 : vector<2x96xf32>
    %16 = vector.extract_strided_slice %9 {offsets = [0, 96], sizes = [2, 32], strides = [1, 1]} : vector<2x128xf32> to vector<2x32xf32>
    %17 = math.tanh %16 : vector<2x32xf32>
    %18 = vector.extract_strided_slice %15 {offsets = [0, 0], sizes = [2, 32], strides = [1, 1]} : vector<2x96xf32> to vector<2x32xf32>
    %19 = vector.extract_strided_slice %15 {offsets = [0, 64], sizes = [2, 32], strides = [1, 1]} : vector<2x96xf32> to vector<2x32xf32>
    %20 = arith.mulf %18, %17 : vector<2x32xf32>
    %21 = math.tanh %20 : vector<2x32xf32>
    %22 = arith.mulf %19, %21 : vector<2x32xf32>
    %23 = vector.extract_strided_slice %7 {offsets = [0, 1, 0], sizes = [2, 1, 128], strides = [1, 1, 1]} : vector<2x8x128xf32> to vector<2x1x128xf32>
    %24 = vector.shape_cast %23 : vector<2x1x128xf32> to vector<2x128xf32>
    %cst_6 = arith.constant dense<0.000000e+00> : vector<2x128xf32>
    %25 = tpu.matmul %22, %1, %cst_6 {dimension_numbers = #tpu.dot_dimension_numbers<[1], [0], [0], [1], [0, 0, 1, 1], [], []>} : vector<2x32xf32>, vector<32x128xf32>, vector<2x128xf32> -> vector<2x128xf32>
    %26 = arith.addf %24, %25 : vector<2x128xf32>
    %27 = vector.extract_strided_slice %26 {offsets = [0, 0], sizes = [2, 96], strides = [1, 1]} : vector<2x128xf32> to vector<2x96xf32>
    %28 = arith.negf %27 : vector<2x96xf32>
    %29 = math.exp %28 : vector<2x96xf32>
    %cst_7 = arith.constant 1.000000e+00 : f32
    %30 = vector.broadcast %cst_7 : f32 to vector<2x96xf32>
    %31 = arith.addf %30, %29 : vector<2x96xf32>
    %32 = arith.divf %30, %31 : vector<2x96xf32>
    %33 = vector.extract_strided_slice %26 {offsets = [0, 96], sizes = [2, 32], strides = [1, 1]} : vector<2x128xf32> to vector<2x32xf32>
    %34 = math.tanh %33 : vector<2x32xf32>
    %35 = vector.extract_strided_slice %32 {offsets = [0, 0], sizes = [2, 32], strides = [1, 1]} : vector<2x96xf32> to vector<2x32xf32>
    %36 = vector.extract_strided_slice %32 {offsets = [0, 32], sizes = [2, 32], strides = [1, 1]} : vector<2x96xf32> to vector<2x32xf32>
    %37 = vector.extract_strided_slice %32 {offsets = [0, 64], sizes = [2, 32], strides = [1, 1]} : vector<2x96xf32> to vector<2x32xf32>
    %38 = arith.mulf %36, %20 : vector<2x32xf32>
    %39 = arith.mulf %35, %34 : vector<2x32xf32>
    %40 = arith.addf %38, %39 : vector<2x32xf32>
    %41 = math.tanh %40 : vector<2x32xf32>
    %42 = arith.mulf %37, %41 : vector<2x32xf32>
    %43 = vector.extract_strided_slice %7 {offsets = [0, 2, 0], sizes = [2, 1, 128], strides = [1, 1, 1]} : vector<2x8x128xf32> to vector<2x1x128xf32>
    %44 = vector.shape_cast %43 : vector<2x1x128xf32> to vector<2x128xf32>
    %cst_8 = arith.constant dense<0.000000e+00> : vector<2x128xf32>
    %45 = tpu.matmul %42, %1, %cst_8 {dimension_numbers = #tpu.dot_dimension_numbers<[1], [0], [0], [1], [0, 0, 1, 1], [], []>} : vector<2x32xf32>, vector<32x128xf32>, vector<2x128xf32> -> vector<2x128xf32>
    %46 = arith.addf %44, %45 : vector<2x128xf32>
    %47 = vector.extract_strided_slice %46 {offsets = [0, 0], sizes = [2, 96], strides = [1, 1]} : vector<2x128xf32> to vector<2x96xf32>
    %48 = arith.negf %47 : vector<2x96xf32>
    %49 = math.exp %48 : vector<2x96xf32>
    %cst_9 = arith.constant 1.000000e+00 : f32
    %50 = vector.broadcast %cst_9 : f32 to vector<2x96xf32>
    %51 = arith.addf %50, %49 : vector<2x96xf32>
    %52 = arith.divf %50, %51 : vector<2x96xf32>
    %53 = vector.extract_strided_slice %46 {offsets = [0, 96], sizes = [2, 32], strides = [1, 1]} : vector<2x128xf32> to vector<2x32xf32>
    %54 = math.tanh %53 : vector<2x32xf32>
    %55 = vector.extract_strided_slice %52 {offsets = [0, 0], sizes = [2, 32], strides = [1, 1]} : vector<2x96xf32> to vector<2x32xf32>
    %56 = vector.extract_strided_slice %52 {offsets = [0, 32], sizes = [2, 32], strides = [1, 1]} : vector<2x96xf32> to vector<2x32xf32>
    %57 = vector.extract_strided_slice %52 {offsets = [0, 64], sizes = [2, 32], strides = [1, 1]} : vector<2x96xf32> to vector<2x32xf32>
    %58 = arith.mulf %56, %40 : vector<2x32xf32>
    %59 = arith.mulf %55, %54 : vector<2x32xf32>
    %60 = arith.addf %58, %59 : vector<2x32xf32>
    %61 = math.tanh %60 : vector<2x32xf32>
    %62 = arith.mulf %57, %61 : vector<2x32xf32>
    %63 = vector.extract_strided_slice %7 {offsets = [0, 3, 0], sizes = [2, 1, 128], strides = [1, 1, 1]} : vector<2x8x128xf32> to vector<2x1x128xf32>
    %64 = vector.shape_cast %63 : vector<2x1x128xf32> to vector<2x128xf32>
    %cst_10 = arith.constant dense<0.000000e+00> : vector<2x128xf32>
    %65 = tpu.matmul %62, %1, %cst_10 {dimension_numbers = #tpu.dot_dimension_numbers<[1], [0], [0], [1], [0, 0, 1, 1], [], []>} : vector<2x32xf32>, vector<32x128xf32>, vector<2x128xf32> -> vector<2x128xf32>
    %66 = arith.addf %64, %65 : vector<2x128xf32>
    %67 = vector.extract_strided_slice %66 {offsets = [0, 0], sizes = [2, 96], strides = [1, 1]} : vector<2x128xf32> to vector<2x96xf32>
    %68 = arith.negf %67 : vector<2x96xf32>
    %69 = math.exp %68 : vector<2x96xf32>
    %cst_11 = arith.constant 1.000000e+00 : f32
    %70 = vector.broadcast %cst_11 : f32 to vector<2x96xf32>
    %71 = arith.addf %70, %69 : vector<2x96xf32>
    %72 = arith.divf %70, %71 : vector<2x96xf32>
    %73 = vector.extract_strided_slice %66 {offsets = [0, 96], sizes = [2, 32], strides = [1, 1]} : vector<2x128xf32> to vector<2x32xf32>
    %74 = math.tanh %73 : vector<2x32xf32>
    %75 = vector.extract_strided_slice %72 {offsets = [0, 0], sizes = [2, 32], strides = [1, 1]} : vector<2x96xf32> to vector<2x32xf32>
    %76 = vector.extract_strided_slice %72 {offsets = [0, 32], sizes = [2, 32], strides = [1, 1]} : vector<2x96xf32> to vector<2x32xf32>
    %77 = vector.extract_strided_slice %72 {offsets = [0, 64], sizes = [2, 32], strides = [1, 1]} : vector<2x96xf32> to vector<2x32xf32>
    %78 = arith.mulf %76, %60 : vector<2x32xf32>
    %79 = arith.mulf %75, %74 : vector<2x32xf32>
    %80 = arith.addf %78, %79 : vector<2x32xf32>
    %81 = math.tanh %80 : vector<2x32xf32>
    %82 = arith.mulf %77, %81 : vector<2x32xf32>
    %83 = vector.extract_strided_slice %7 {offsets = [0, 4, 0], sizes = [2, 1, 128], strides = [1, 1, 1]} : vector<2x8x128xf32> to vector<2x1x128xf32>
    %84 = vector.shape_cast %83 : vector<2x1x128xf32> to vector<2x128xf32>
    %cst_12 = arith.constant dense<0.000000e+00> : vector<2x128xf32>
    %85 = tpu.matmul %82, %1, %cst_12 {dimension_numbers = #tpu.dot_dimension_numbers<[1], [0], [0], [1], [0, 0, 1, 1], [], []>} : vector<2x32xf32>, vector<32x128xf32>, vector<2x128xf32> -> vector<2x128xf32>
    %86 = arith.addf %84, %85 : vector<2x128xf32>
    %87 = vector.extract_strided_slice %86 {offsets = [0, 0], sizes = [2, 96], strides = [1, 1]} : vector<2x128xf32> to vector<2x96xf32>
    %88 = arith.negf %87 : vector<2x96xf32>
    %89 = math.exp %88 : vector<2x96xf32>
    %cst_13 = arith.constant 1.000000e+00 : f32
    %90 = vector.broadcast %cst_13 : f32 to vector<2x96xf32>
    %91 = arith.addf %90, %89 : vector<2x96xf32>
    %92 = arith.divf %90, %91 : vector<2x96xf32>
    %93 = vector.extract_strided_slice %86 {offsets = [0, 96], sizes = [2, 32], strides = [1, 1]} : vector<2x128xf32> to vector<2x32xf32>
    %94 = math.tanh %93 : vector<2x32xf32>
    %95 = vector.extract_strided_slice %92 {offsets = [0, 0], sizes = [2, 32], strides = [1, 1]} : vector<2x96xf32> to vector<2x32xf32>
    %96 = vector.extract_strided_slice %92 {offsets = [0, 32], sizes = [2, 32], strides = [1, 1]} : vector<2x96xf32> to vector<2x32xf32>
    %97 = vector.extract_strided_slice %92 {offsets = [0, 64], sizes = [2, 32], strides = [1, 1]} : vector<2x96xf32> to vector<2x32xf32>
    %98 = arith.mulf %96, %80 : vector<2x32xf32>
    %99 = arith.mulf %95, %94 : vector<2x32xf32>
    %100 = arith.addf %98, %99 : vector<2x32xf32>
    %101 = math.tanh %100 : vector<2x32xf32>
    %102 = arith.mulf %97, %101 : vector<2x32xf32>
    %103 = vector.extract_strided_slice %7 {offsets = [0, 5, 0], sizes = [2, 1, 128], strides = [1, 1, 1]} : vector<2x8x128xf32> to vector<2x1x128xf32>
    %104 = vector.shape_cast %103 : vector<2x1x128xf32> to vector<2x128xf32>
    %cst_14 = arith.constant dense<0.000000e+00> : vector<2x128xf32>
    %105 = tpu.matmul %102, %1, %cst_14 {dimension_numbers = #tpu.dot_dimension_numbers<[1], [0], [0], [1], [0, 0, 1, 1], [], []>} : vector<2x32xf32>, vector<32x128xf32>, vector<2x128xf32> -> vector<2x128xf32>
    %106 = arith.addf %104, %105 : vector<2x128xf32>
    %107 = vector.extract_strided_slice %106 {offsets = [0, 0], sizes = [2, 96], strides = [1, 1]} : vector<2x128xf32> to vector<2x96xf32>
    %108 = arith.negf %107 : vector<2x96xf32>
    %109 = math.exp %108 : vector<2x96xf32>
    %cst_15 = arith.constant 1.000000e+00 : f32
    %110 = vector.broadcast %cst_15 : f32 to vector<2x96xf32>
    %111 = arith.addf %110, %109 : vector<2x96xf32>
    %112 = arith.divf %110, %111 : vector<2x96xf32>
    %113 = vector.extract_strided_slice %106 {offsets = [0, 96], sizes = [2, 32], strides = [1, 1]} : vector<2x128xf32> to vector<2x32xf32>
    %114 = math.tanh %113 : vector<2x32xf32>
    %115 = vector.extract_strided_slice %112 {offsets = [0, 0], sizes = [2, 32], strides = [1, 1]} : vector<2x96xf32> to vector<2x32xf32>
    %116 = vector.extract_strided_slice %112 {offsets = [0, 32], sizes = [2, 32], strides = [1, 1]} : vector<2x96xf32> to vector<2x32xf32>
    %117 = vector.extract_strided_slice %112 {offsets = [0, 64], sizes = [2, 32], strides = [1, 1]} : vector<2x96xf32> to vector<2x32xf32>
    %118 = arith.mulf %116, %100 : vector<2x32xf32>
    %119 = arith.mulf %115, %114 : vector<2x32xf32>
    %120 = arith.addf %118, %119 : vector<2x32xf32>
    %121 = math.tanh %120 : vector<2x32xf32>
    %122 = arith.mulf %117, %121 : vector<2x32xf32>
    %123 = vector.extract_strided_slice %7 {offsets = [0, 6, 0], sizes = [2, 1, 128], strides = [1, 1, 1]} : vector<2x8x128xf32> to vector<2x1x128xf32>
    %124 = vector.shape_cast %123 : vector<2x1x128xf32> to vector<2x128xf32>
    %cst_16 = arith.constant dense<0.000000e+00> : vector<2x128xf32>
    %125 = tpu.matmul %122, %1, %cst_16 {dimension_numbers = #tpu.dot_dimension_numbers<[1], [0], [0], [1], [0, 0, 1, 1], [], []>} : vector<2x32xf32>, vector<32x128xf32>, vector<2x128xf32> -> vector<2x128xf32>
    %126 = arith.addf %124, %125 : vector<2x128xf32>
    %127 = vector.extract_strided_slice %126 {offsets = [0, 0], sizes = [2, 96], strides = [1, 1]} : vector<2x128xf32> to vector<2x96xf32>
    %128 = arith.negf %127 : vector<2x96xf32>
    %129 = math.exp %128 : vector<2x96xf32>
    %cst_17 = arith.constant 1.000000e+00 : f32
    %130 = vector.broadcast %cst_17 : f32 to vector<2x96xf32>
    %131 = arith.addf %130, %129 : vector<2x96xf32>
    %132 = arith.divf %130, %131 : vector<2x96xf32>
    %133 = vector.extract_strided_slice %126 {offsets = [0, 96], sizes = [2, 32], strides = [1, 1]} : vector<2x128xf32> to vector<2x32xf32>
    %134 = math.tanh %133 : vector<2x32xf32>
    %135 = vector.extract_strided_slice %132 {offsets = [0, 0], sizes = [2, 32], strides = [1, 1]} : vector<2x96xf32> to vector<2x32xf32>
    %136 = vector.extract_strided_slice %132 {offsets = [0, 32], sizes = [2, 32], strides = [1, 1]} : vector<2x96xf32> to vector<2x32xf32>
    %137 = vector.extract_strided_slice %132 {offsets = [0, 64], sizes = [2, 32], strides = [1, 1]} : vector<2x96xf32> to vector<2x32xf32>
    %138 = arith.mulf %136, %120 : vector<2x32xf32>
    %139 = arith.mulf %135, %134 : vector<2x32xf32>
    %140 = arith.addf %138, %139 : vector<2x32xf32>
    %141 = math.tanh %140 : vector<2x32xf32>
    %142 = arith.mulf %137, %141 : vector<2x32xf32>
    %143 = vector.extract_strided_slice %7 {offsets = [0, 7, 0], sizes = [2, 1, 128], strides = [1, 1, 1]} : vector<2x8x128xf32> to vector<2x1x128xf32>
    %144 = vector.shape_cast %143 : vector<2x1x128xf32> to vector<2x128xf32>
    %cst_18 = arith.constant dense<0.000000e+00> : vector<2x128xf32>
    %145 = tpu.matmul %142, %1, %cst_18 {dimension_numbers = #tpu.dot_dimension_numbers<[1], [0], [0], [1], [0, 0, 1, 1], [], []>} : vector<2x32xf32>, vector<32x128xf32>, vector<2x128xf32> -> vector<2x128xf32>
    %146 = arith.addf %144, %145 : vector<2x128xf32>
    %147 = vector.extract_strided_slice %146 {offsets = [0, 0], sizes = [2, 96], strides = [1, 1]} : vector<2x128xf32> to vector<2x96xf32>
    %148 = arith.negf %147 : vector<2x96xf32>
    %149 = math.exp %148 : vector<2x96xf32>
    %cst_19 = arith.constant 1.000000e+00 : f32
    %150 = vector.broadcast %cst_19 : f32 to vector<2x96xf32>
    %151 = arith.addf %150, %149 : vector<2x96xf32>
    %152 = arith.divf %150, %151 : vector<2x96xf32>
    %153 = vector.extract_strided_slice %146 {offsets = [0, 96], sizes = [2, 32], strides = [1, 1]} : vector<2x128xf32> to vector<2x32xf32>
    %154 = math.tanh %153 : vector<2x32xf32>
    %155 = vector.extract_strided_slice %152 {offsets = [0, 0], sizes = [2, 32], strides = [1, 1]} : vector<2x96xf32> to vector<2x32xf32>
    %156 = vector.extract_strided_slice %152 {offsets = [0, 32], sizes = [2, 32], strides = [1, 1]} : vector<2x96xf32> to vector<2x32xf32>
    %157 = vector.extract_strided_slice %152 {offsets = [0, 64], sizes = [2, 32], strides = [1, 1]} : vector<2x96xf32> to vector<2x32xf32>
    %158 = arith.mulf %156, %140 : vector<2x32xf32>
    %159 = arith.mulf %155, %154 : vector<2x32xf32>
    %160 = arith.addf %158, %159 : vector<2x32xf32>
    %161 = math.tanh %160 : vector<2x32xf32>
    %162 = arith.mulf %157, %161 : vector<2x32xf32>
    %c0_20 = arith.constant 0 : index
    %c0_21 = arith.constant 0 : index
    %163 = vector.load %arg3[%c0_20, %c0_21] : memref<33x16xf32, #tpu.memory_space<vmem>>, vector<32x16xf32>
    %c32 = arith.constant 32 : index
    %c0_22 = arith.constant 0 : index
    %164 = vector.load %arg3[%c32, %c0_22] : memref<33x16xf32, #tpu.memory_space<vmem>>, vector<1x16xf32>
    %cst_23 = arith.constant dense<0.000000e+00> : vector<2x16xf32>
    %165 = tpu.matmul %162, %163, %cst_23 {dimension_numbers = #tpu.dot_dimension_numbers<[1], [0], [0], [1], [0, 0, 1, 1], [], []>} : vector<2x32xf32>, vector<32x16xf32>, vector<2x16xf32> -> vector<2x16xf32>
    %166 = vector.broadcast %164 : vector<1x16xf32> to vector<2x16xf32>
    %167 = arith.addf %165, %166 : vector<2x16xf32>
    %c0_24 = arith.constant 0 : index
    %c0_25 = arith.constant 0 : index
    %168 = vector.load %arg2[%c0_24, %c0_25] : memref<32x16xf32, #tpu.memory_space<vmem>>, vector<32x16xf32>
    %169 = vector.extract_strided_slice %168 {offsets = [0, 0], sizes = [8, 16], strides = [1, 1]} : vector<32x16xf32> to vector<8x16xf32>
    %170 = vector.extract_strided_slice %168 {offsets = [8, 0], sizes = [1, 16], strides = [1, 1]} : vector<32x16xf32> to vector<1x16xf32>
    %171 = vector.extract_strided_slice %168 {offsets = [16, 0], sizes = [16, 16], strides = [1, 1]} : vector<32x16xf32> to vector<16x16xf32>
    %cst_26 = arith.constant dense<0.000000e+00> : vector<2x16xf32>
    %172 = tpu.matmul %167, %171, %cst_26 {dimension_numbers = #tpu.dot_dimension_numbers<[1], [0], [0], [1], [0, 0, 1, 1], [], []>} : vector<2x16xf32>, vector<16x16xf32>, vector<2x16xf32> -> vector<2x16xf32>
    %cst_27 = arith.constant 0.000000e+00 : f32
    %173 = vector.broadcast %cst_27 : f32 to vector<2x32xf32>
    %174 = vector.extract_strided_slice %172 {offsets = [0, 0], sizes = [2, 1], strides = [1, 1]} : vector<2x16xf32> to vector<2x1xf32>
    %175 = vector.broadcast %174 : vector<2x1xf32> to vector<2x32xf32>
    %176 = arith.mulf %175, %22 : vector<2x32xf32>
    %177 = arith.addf %173, %176 : vector<2x32xf32>
    %178 = vector.extract_strided_slice %172 {offsets = [0, 1], sizes = [2, 1], strides = [1, 1]} : vector<2x16xf32> to vector<2x1xf32>
    %179 = vector.broadcast %178 : vector<2x1xf32> to vector<2x32xf32>
    %180 = arith.mulf %179, %42 : vector<2x32xf32>
    %181 = arith.addf %177, %180 : vector<2x32xf32>
    %182 = vector.extract_strided_slice %172 {offsets = [0, 2], sizes = [2, 1], strides = [1, 1]} : vector<2x16xf32> to vector<2x1xf32>
    %183 = vector.broadcast %182 : vector<2x1xf32> to vector<2x32xf32>
    %184 = arith.mulf %183, %62 : vector<2x32xf32>
    %185 = arith.addf %181, %184 : vector<2x32xf32>
    %186 = vector.extract_strided_slice %172 {offsets = [0, 3], sizes = [2, 1], strides = [1, 1]} : vector<2x16xf32> to vector<2x1xf32>
    %187 = vector.broadcast %186 : vector<2x1xf32> to vector<2x32xf32>
    %188 = arith.mulf %187, %82 : vector<2x32xf32>
    %189 = arith.addf %185, %188 : vector<2x32xf32>
    %190 = vector.extract_strided_slice %172 {offsets = [0, 4], sizes = [2, 1], strides = [1, 1]} : vector<2x16xf32> to vector<2x1xf32>
    %191 = vector.broadcast %190 : vector<2x1xf32> to vector<2x32xf32>
    %192 = arith.mulf %191, %102 : vector<2x32xf32>
    %193 = arith.addf %189, %192 : vector<2x32xf32>
    %194 = vector.extract_strided_slice %172 {offsets = [0, 5], sizes = [2, 1], strides = [1, 1]} : vector<2x16xf32> to vector<2x1xf32>
    %195 = vector.broadcast %194 : vector<2x1xf32> to vector<2x32xf32>
    %196 = arith.mulf %195, %122 : vector<2x32xf32>
    %197 = arith.addf %193, %196 : vector<2x32xf32>
    %198 = vector.extract_strided_slice %172 {offsets = [0, 6], sizes = [2, 1], strides = [1, 1]} : vector<2x16xf32> to vector<2x1xf32>
    %199 = vector.broadcast %198 : vector<2x1xf32> to vector<2x32xf32>
    %200 = arith.mulf %199, %142 : vector<2x32xf32>
    %201 = arith.addf %197, %200 : vector<2x32xf32>
    %202 = vector.extract_strided_slice %172 {offsets = [0, 7], sizes = [2, 1], strides = [1, 1]} : vector<2x16xf32> to vector<2x1xf32>
    %203 = vector.broadcast %202 : vector<2x1xf32> to vector<2x32xf32>
    %204 = arith.mulf %203, %162 : vector<2x32xf32>
    %205 = arith.addf %201, %204 : vector<2x32xf32>
    %206 = vector.extract_strided_slice %172 {offsets = [0, 8], sizes = [2, 1], strides = [1, 1]} : vector<2x16xf32> to vector<2x1xf32>
    %207 = vector.broadcast %206 : vector<2x1xf32> to vector<2x32xf32>
    %208 = arith.addf %205, %207 : vector<2x32xf32>
    %cst_28 = arith.constant dense<0xFF800000> : vector<2xf32>
    %209 = vector.multi_reduction <maximumf>, %208, %cst_28 [1] : vector<2x32xf32> to vector<2xf32>
    %210 = vector.shape_cast %209 : vector<2xf32> to vector<2x1xf32>
    %211 = vector.broadcast %210 : vector<2x1xf32> to vector<2x32xf32>
    %212 = arith.subf %208, %211 : vector<2x32xf32>
    %213 = math.exp %212 : vector<2x32xf32>
    %cst_29 = arith.constant dense<0.000000e+00> : vector<2xf32>
    %214 = vector.multi_reduction <add>, %213, %cst_29 [1] : vector<2x32xf32> to vector<2xf32>
    %215 = vector.shape_cast %214 : vector<2xf32> to vector<2x1xf32>
    %216 = tpu.reciprocal %215 {approx = true} : vector<2x1xf32> -> vector<2x1xf32>
    %217 = vector.broadcast %216 : vector<2x1xf32> to vector<2x32xf32>
    %218 = arith.mulf %213, %217 : vector<2x32xf32>
    %cst_30 = arith.constant 0.000000e+00 : f32
    %219 = vector.broadcast %cst_30 : f32 to vector<2x16xf32>
    %220 = arith.mulf %218, %22 : vector<2x32xf32>
    %cst_31 = arith.constant dense<0.000000e+00> : vector<2xf32>
    %221 = vector.multi_reduction <add>, %220, %cst_31 [1] : vector<2x32xf32> to vector<2xf32>
    %222 = vector.shape_cast %221 : vector<2xf32> to vector<2x1xf32>
    %223 = vector.extract_strided_slice %169 {offsets = [0, 0], sizes = [1, 16], strides = [1, 1]} : vector<8x16xf32> to vector<1x16xf32>
    %224 = vector.broadcast %222 : vector<2x1xf32> to vector<2x16xf32>
    %225 = vector.broadcast %223 : vector<1x16xf32> to vector<2x16xf32>
    %226 = arith.mulf %224, %225 : vector<2x16xf32>
    %227 = arith.addf %219, %226 : vector<2x16xf32>
    %228 = arith.mulf %218, %42 : vector<2x32xf32>
    %cst_32 = arith.constant dense<0.000000e+00> : vector<2xf32>
    %229 = vector.multi_reduction <add>, %228, %cst_32 [1] : vector<2x32xf32> to vector<2xf32>
    %230 = vector.shape_cast %229 : vector<2xf32> to vector<2x1xf32>
    %231 = vector.extract_strided_slice %169 {offsets = [1, 0], sizes = [1, 16], strides = [1, 1]} : vector<8x16xf32> to vector<1x16xf32>
    %232 = vector.broadcast %230 : vector<2x1xf32> to vector<2x16xf32>
    %233 = vector.broadcast %231 : vector<1x16xf32> to vector<2x16xf32>
    %234 = arith.mulf %232, %233 : vector<2x16xf32>
    %235 = arith.addf %227, %234 : vector<2x16xf32>
    %236 = arith.mulf %218, %62 : vector<2x32xf32>
    %cst_33 = arith.constant dense<0.000000e+00> : vector<2xf32>
    %237 = vector.multi_reduction <add>, %236, %cst_33 [1] : vector<2x32xf32> to vector<2xf32>
    %238 = vector.shape_cast %237 : vector<2xf32> to vector<2x1xf32>
    %239 = vector.extract_strided_slice %169 {offsets = [2, 0], sizes = [1, 16], strides = [1, 1]} : vector<8x16xf32> to vector<1x16xf32>
    %240 = vector.broadcast %238 : vector<2x1xf32> to vector<2x16xf32>
    %241 = vector.broadcast %239 : vector<1x16xf32> to vector<2x16xf32>
    %242 = arith.mulf %240, %241 : vector<2x16xf32>
    %243 = arith.addf %235, %242 : vector<2x16xf32>
    %244 = arith.mulf %218, %82 : vector<2x32xf32>
    %cst_34 = arith.constant dense<0.000000e+00> : vector<2xf32>
    %245 = vector.multi_reduction <add>, %244, %cst_34 [1] : vector<2x32xf32> to vector<2xf32>
    %246 = vector.shape_cast %245 : vector<2xf32> to vector<2x1xf32>
    %247 = vector.extract_strided_slice %169 {offsets = [3, 0], sizes = [1, 16], strides = [1, 1]} : vector<8x16xf32> to vector<1x16xf32>
    %248 = vector.broadcast %246 : vector<2x1xf32> to vector<2x16xf32>
    %249 = vector.broadcast %247 : vector<1x16xf32> to vector<2x16xf32>
    %250 = arith.mulf %248, %249 : vector<2x16xf32>
    %251 = arith.addf %243, %250 : vector<2x16xf32>
    %252 = arith.mulf %218, %102 : vector<2x32xf32>
    %cst_35 = arith.constant dense<0.000000e+00> : vector<2xf32>
    %253 = vector.multi_reduction <add>, %252, %cst_35 [1] : vector<2x32xf32> to vector<2xf32>
    %254 = vector.shape_cast %253 : vector<2xf32> to vector<2x1xf32>
    %255 = vector.extract_strided_slice %169 {offsets = [4, 0], sizes = [1, 16], strides = [1, 1]} : vector<8x16xf32> to vector<1x16xf32>
    %256 = vector.broadcast %254 : vector<2x1xf32> to vector<2x16xf32>
    %257 = vector.broadcast %255 : vector<1x16xf32> to vector<2x16xf32>
    %258 = arith.mulf %256, %257 : vector<2x16xf32>
    %259 = arith.addf %251, %258 : vector<2x16xf32>
    %260 = arith.mulf %218, %122 : vector<2x32xf32>
    %cst_36 = arith.constant dense<0.000000e+00> : vector<2xf32>
    %261 = vector.multi_reduction <add>, %260, %cst_36 [1] : vector<2x32xf32> to vector<2xf32>
    %262 = vector.shape_cast %261 : vector<2xf32> to vector<2x1xf32>
    %263 = vector.extract_strided_slice %169 {offsets = [5, 0], sizes = [1, 16], strides = [1, 1]} : vector<8x16xf32> to vector<1x16xf32>
    %264 = vector.broadcast %262 : vector<2x1xf32> to vector<2x16xf32>
    %265 = vector.broadcast %263 : vector<1x16xf32> to vector<2x16xf32>
    %266 = arith.mulf %264, %265 : vector<2x16xf32>
    %267 = arith.addf %259, %266 : vector<2x16xf32>
    %268 = arith.mulf %218, %142 : vector<2x32xf32>
    %cst_37 = arith.constant dense<0.000000e+00> : vector<2xf32>
    %269 = vector.multi_reduction <add>, %268, %cst_37 [1] : vector<2x32xf32> to vector<2xf32>
    %270 = vector.shape_cast %269 : vector<2xf32> to vector<2x1xf32>
    %271 = vector.extract_strided_slice %169 {offsets = [6, 0], sizes = [1, 16], strides = [1, 1]} : vector<8x16xf32> to vector<1x16xf32>
    %272 = vector.broadcast %270 : vector<2x1xf32> to vector<2x16xf32>
    %273 = vector.broadcast %271 : vector<1x16xf32> to vector<2x16xf32>
    %274 = arith.mulf %272, %273 : vector<2x16xf32>
    %275 = arith.addf %267, %274 : vector<2x16xf32>
    %276 = arith.mulf %218, %162 : vector<2x32xf32>
    %cst_38 = arith.constant dense<0.000000e+00> : vector<2xf32>
    %277 = vector.multi_reduction <add>, %276, %cst_38 [1] : vector<2x32xf32> to vector<2xf32>
    %278 = vector.shape_cast %277 : vector<2xf32> to vector<2x1xf32>
    %279 = vector.extract_strided_slice %169 {offsets = [7, 0], sizes = [1, 16], strides = [1, 1]} : vector<8x16xf32> to vector<1x16xf32>
    %280 = vector.broadcast %278 : vector<2x1xf32> to vector<2x16xf32>
    %281 = vector.broadcast %279 : vector<1x16xf32> to vector<2x16xf32>
    %282 = arith.mulf %280, %281 : vector<2x16xf32>
    %283 = arith.addf %275, %282 : vector<2x16xf32>
    %284 = vector.broadcast %170 : vector<1x16xf32> to vector<2x16xf32>
    %285 = arith.addf %283, %284 : vector<2x16xf32>
    %c0_39 = arith.constant 0 : index
    %c0_40 = arith.constant 0 : index
    %286 = vector.load %arg4[%c0_39, %c0_40] : memref<49x4xf32, #tpu.memory_space<vmem>>, vector<32x4xf32>
    %c32_41 = arith.constant 32 : index
    %c0_42 = arith.constant 0 : index
    %287 = vector.load %arg4[%c32_41, %c0_42] : memref<49x4xf32, #tpu.memory_space<vmem>>, vector<16x4xf32>
    %c48 = arith.constant 48 : index
    %c0_43 = arith.constant 0 : index
    %288 = vector.load %arg4[%c48, %c0_43] : memref<49x4xf32, #tpu.memory_space<vmem>>, vector<1x4xf32>
    %cst_44 = arith.constant dense<0.000000e+00> : vector<2x4xf32>
    %289 = tpu.matmul %162, %286, %cst_44 {dimension_numbers = #tpu.dot_dimension_numbers<[1], [0], [0], [1], [0, 0, 1, 1], [], []>} : vector<2x32xf32>, vector<32x4xf32>, vector<2x4xf32> -> vector<2x4xf32>
    %cst_45 = arith.constant dense<0.000000e+00> : vector<2x4xf32>
    %290 = tpu.matmul %285, %287, %cst_45 {dimension_numbers = #tpu.dot_dimension_numbers<[1], [0], [0], [1], [0, 0, 1, 1], [], []>} : vector<2x16xf32>, vector<16x4xf32>, vector<2x4xf32> -> vector<2x4xf32>
    %291 = arith.addf %289, %290 : vector<2x4xf32>
    %292 = vector.broadcast %288 : vector<1x4xf32> to vector<2x4xf32>
    %293 = arith.addf %291, %292 : vector<2x4xf32>
    %c0_46 = arith.constant 0 : index
    %c0_47 = arith.constant 0 : index
    %294 = vector.load %arg5[%c0_46, %c0_47] : memref<2x4xf32, #tpu.memory_space<vmem>>, vector<2x4xf32>
    tpu.vector_store %arg5[%c0_46, %c0_47], %293 {strides = array<i32>} : memref<2x4xf32, #tpu.memory_space<vmem>>, vector<2x4xf32>,
    return
  }
}

</mosaic_0001>

<llo_original>
// kernel: tpu_custom_call.1
$region0: #{tpu_custom_call.1}
  #allocation0 [shape = 'u32[]', space=smem, size = 0x4, offset = 0x4, fixed_abs, tag = 'smem constant byte address 0x4 - core index']
  #allocation1 [shape = 'u32[144,128]{1,0:T(1,128)}', space=vmem, size = 0x12000, scoped, tag = 'internal scratch']
  %s0 = inlined_call_operand.vmem [shape: f32[16,4], index: 0, kind: input, shape index: {}]
  %s1 = inlined_call_operand.vmem [shape: f32[41,128], index: 1, kind: input, shape index: {}]
  %s2 = inlined_call_operand.vmem [shape: f32[32,16], index: 2, kind: input, shape index: {}]
  %s3 = inlined_call_operand.vmem [shape: f32[33,16], index: 3, kind: input, shape index: {}]
  %s4 = inlined_call_operand.vmem [shape: f32[49,4], index: 4, kind: input, shape index: {}]
  %s5 = inlined_call_operand.hbm [shape: f32[2,4], index: 5, kind: output, shape index: {}]
  %s6 = sld [smem:[#allocation0]]
  $region30: #{tpu_custom_call.1} parent=0
    _
  %s8 = ssub.s32 1, %s6
  %s9 = scalar_select 0, %s8, %s6
  $region1: #{tpu_custom_call.1} parent=0
    #allocation2 [shape = 'u8[1024]{0}', space=vmem, size = 0x400, scoped, tag = 'output window, operand 0, single buffered']
    #allocation3 [shape = 's32[1]{0}', space=sflag, size = 0x4, scoped, tag = 'scoped memory for tpu_custom_call.1']
    %10 = vsyncpa [#allocation3], 0
    // Predicated region
    $region2: #{tpu_custom_call.1} parent=1 // pred_check
      _
    $region3: #{tpu_custom_call.1} parent=1 // pred_check_branch
      %12 = sbr.rel (0) target = $region5
    $region4: #{tpu_custom_call.1} parent=1 // pred_region
      _
    $region5: #{tpu_custom_call.1} parent=1 // pred_fallthru
      _
    // Predicated region
    $region6: #{tpu_custom_call.1} parent=1 // pred_check
      _
    $region7: #{tpu_custom_call.1} parent=1 // pred_check_branch
      %14 = sbr.rel (0) target = $region9
    $region8: #{tpu_custom_call.1} parent=1 // pred_region
      _
    $region9: #{tpu_custom_call.1} parent=1 // pred_fallthru
      _
    // Predicated region
    $region10: #{tpu_custom_call.1} parent=1 // pred_check
      _
    $region11: #{tpu_custom_call.1} parent=1 // pred_check_branch
      %16 = sbr.rel (0) target = $region13
    $region12: #{tpu_custom_call.1} parent=1 // pred_region
      _
    $region13: #{tpu_custom_call.1} parent=1 // pred_fallthru
      _
    // Predicated region
    $region14: #{tpu_custom_call.1} parent=1 // pred_check
      _
    $region15: #{tpu_custom_call.1} parent=1 // pred_check_branch
      %18 = sbr.rel (0) target = $region17
    $region16: #{tpu_custom_call.1} parent=1 // pred_region
      _
    $region17: #{tpu_custom_call.1} parent=1 // pred_fallthru
      _
    // Predicated region
    $region18: #{tpu_custom_call.1} parent=1 // pred_check
      _
    $region19: #{tpu_custom_call.1} parent=1 // pred_check_branch
      %20 = sbr.rel (0) target = $region21
    $region20: #{tpu_custom_call.1} parent=1 // pred_region
      _
    $region21: #{tpu_custom_call.1} parent=1 // pred_fallthru
      _
    %v21 = vld [vmem:[%s1] sm:$0xf]
    %v22 = vld [vmem:[%s1 + $0x8] sm:$0xff]
    %v23 = vld [vmem:[%s1 + $0x10] sm:$0xff]
    %v24 = vld [vmem:[%s1 + $0x18] sm:$0xff]
    %v25 = vld [vmem:[%s1 + $0x20] sm:$0xff]
    %v26 = vld [vmem:[%s1 + $0x28] sm:$0x1]
    %v27 = vld [vmem:[%s0] sm:$0xff]
    %v28 = vld [vmem:[%s0 + $0x8] sm:$0xff]
    %v29 = vlaneseq
    %v30 = vshrl.u32 %v29, 7
    %v31 = vsub.s32 0, %v30
    %v32 = vrot.slane %v26, %v31
    %vm33 = vcmask 31744
    %v35 = vsel %vm33, %v27, 0
    %v38 = vsel %vm33, %v28, 0
    %vm40 = vcmask 1043456
    %v42 = vsel %vm40, %v21, 0
    %44 = vmatprep.subr.mxu0 0.0
    %45 = vmatpush1.msra.mxu0 %v42
    %46 = vmatprep.subr.mxu0 0.0
    %47 = vmatpush1.msra.mxu0 0.0
    %48 = vmatprep.subr.mxu0 0.0
    %49 = vmatpush1.msra.mxu0 0.0
    %50 = vmatprep.subr.mxu0 0.0
    %51 = vmatpush1.msra.mxu0 0.0
    %52 = vmatprep.subr.mxu0 0.0
    %53 = vmatpush1.msra.mxu0 0.0
    %54 = vmatprep.subr.mxu0 0.0
    %55 = vmatpush1.msra.mxu0 0.0
    %56 = vmatprep.subr.mxu0 0.0
    %57 = vmatpush1.msra.mxu0 0.0
    %58 = vmatprep.subr.mxu0 0.0
    %59 = vmatpush1.msra.mxu0 0.0
    %60 = vmatprep.subr.mxu0 0.0
    %61 = vmatpush1.msra.mxu0 0.0
    %62 = vmatprep.subr.mxu0 0.0
    %63 = vmatpush1.msra.mxu0 0.0
    %64 = vmatprep.subr.mxu0 0.0
    %65 = vmatpush1.msra.mxu0 0.0
    %66 = vmatprep.subr.mxu0 0.0
    %67 = vmatpush1.msra.mxu0 0.0
    %68 = vmatprep.subr.mxu0 0.0
    %69 = vmatpush1.msra.mxu0 0.0
    %70 = vmatprep.subr.mxu0 0.0
    %71 = vmatpush1.msra.mxu0 0.0
    %72 = vmatprep.subr.mxu0 0.0
    %73 = vmatpush1.msra.mxu0 0.0
    %74 = vmatprep.subr.mxu0 0.0
    %75 = vmatpush1.msra.mxu0 0.0
    %76 = vmatprep.subr.mxu0 0.0
    %77 = vmatpush1.msra.mxu0 0.0
    %78 = vmatprep.subr.mxu0 0.0
    %79 = vmatpush1.msra.mxu0 0.0
    %80 = vmatprep.subr.mxu0 0.0
    %81 = vmatpush1.msra.mxu0 0.0
    %82 = vmatprep.subr.mxu0 0.0
    %83 = vmatpush1.msra.mxu0 0.0
    %84 = vmatprep.subr.mxu0 0.0
    %85 = vmatpush1.msra.mxu0 0.0
    %86 = vmatprep.subr.mxu0 0.0
    %87 = vmatpush1.msra.mxu0 0.0
    %88 = vmatprep.subr.mxu0 0.0
    %89 = vmatpush1.msra.mxu0 0.0
    %90 = vmatprep.subr.mxu0 0.0
    %91 = vmatpush1.msra.mxu0 0.0
    %92 = vmatprep.subr.mxu0 0.0
    %93 = vmatpush1.msra.mxu0 0.0
    %94 = vmatprep.subr.mxu0 0.0
    %95 = vmatpush1.msra.mxu0 0.0
    %96 = vmatprep.subr.mxu0 0.0
    %97 = vmatpush1.msra.mxu0 0.0
    %98 = vmatprep.subr.mxu0 0.0
    %99 = vmatpush1.msra.mxu0 0.0
    %100 = vmatprep.subr.mxu0 0.0
    %101 = vmatpush1.msra.mxu0 0.0
    %102 = vmatprep.subr.mxu0 0.0
    %103 = vmatpush1.msra.mxu0 0.0
    %104 = vmatprep.subr.mxu0 0.0
    %105 = vmatpush1.msra.mxu0 0.0
    %106 = vmatprep.subr.mxu0 0.0
    %107 = vmatpush1.msra.mxu0 0.0
    %108 = vmatprep.mubr.f32.mxu0 0.0
    %109 = vmatmul.mubr.f32.gmra.mrb[0].mxu0 %v35
    %v110 = vpop.f32.mrb[0].mxu0
    %v111 = vadd.f32 %v32, %v110
    %v112 = vpop.f32.mrb[0].mxu0
    %113 = vmatprep.mubr.f32.mxu0 0.0
    %114 = vmatmul.mubr.f32.gmra.mrb[0].mxu0 %v38
    %v115 = vpop.f32.mrb[0].mxu0
    %v116 = vadd.f32 %v32, %v115
    %v117 = vpop.f32.mrb[0].mxu0
    %118 = vdwg.mxu0
    %v119 = vxor.u32 %v111, 2147483648
    %v120 = vxor.u32 %v116, 2147483648
    %v121 = vmul.f32 %v119, 1.442695
    %v122 = vpow.pop %v121
    %v123 = vmul.f32 %v120, 1.442695
    %v124 = vpow.pop %v123
    %v125 = vadd.f32 %v122, 1.0
    %v126 = vadd.f32 %v124, 1.0
    %v127 = vrcp.pop %v125
    %v128 = vmul.f32 1.0, %v127
    %v129 = vrcp.pop %v126
    %v130 = vmul.f32 1.0, %v129
    %v131 = vtanh.pop %v111
    %v132 = vtanh.pop %v116
    %135 = vrot.lane.b32.xlu0 %v131, 32
    %v136 = vpop.permute.xlu0 %135
    %137 = vrot.lane.b32.xlu0 %v132, 32
    %v138 = vpop.permute.xlu0 %137
    %v141 = vmul.f32 %v128, %v136
    %v142 = vmul.f32 %v130, %v138
    %v143 = vtanh.pop %v141
    %v144 = vtanh.pop %v142
    %147 = vrot.lane.b32.xlu0 %v143, 64
    %v148 = vpop.permute.xlu0 %147
    %149 = vrot.lane.b32.xlu0 %v144, 64
    %v150 = vpop.permute.xlu0 %149
    %v153 = vmul.f32 %v128, %v148
    %v154 = vmul.f32 %v130, %v150
    %v157 = vrot.slane %v154, 7
    %vm158 = vcmask 1041409
    %v159 = vsel %vm158, %v157, %v153
    %160 = vrot.lane.b32.xlu0 %v159, 64
    %v161 = vpop.permute.xlu0 %160
    %vm162 = vcmask 261120
    %v163 = vsel %vm162, %v161, 0
    %165 = vmatprep.subr.mxu0 0.0
    %166 = vmatpush1.msra.mxu0 %v22
    %167 = vmatprep.subr.mxu0 0.0
    %168 = vmatpush1.msra.mxu0 %v23
    %169 = vmatprep.subr.mxu0 0.0
    %170 = vmatpush1.msra.mxu0 %v24
    %171 = vmatprep.subr.mxu0 0.0
    %172 = vmatpush1.msra.mxu0 %v25
    %173 = vmatprep.subr.mxu0 0.0
    %174 = vmatpush1.msra.mxu0 0.0
    %175 = vmatprep.subr.mxu0 0.0
    %176 = vmatpush1.msra.mxu0 0.0
    %177 = vmatprep.subr.mxu0 0.0
    %178 = vmatpush1.msra.mxu0 0.0
    %179 = vmatprep.subr.mxu0 0.0
    %180 = vmatpush1.msra.mxu0 0.0
    %181 = vmatprep.subr.mxu0 0.0
    %182 = vmatpush1.msra.mxu0 0.0
    %183 = vmatprep.subr.mxu0 0.0
    %184 = vmatpush1.msra.mxu0 0.0
    %185 = vmatprep.subr.mxu0 0.0
    %186 = vmatpush1.msra.mxu0 0.0
    %187 = vmatprep.subr.mxu0 0.0
    %188 = vmatpush1.msra.mxu0 0.0
    %189 = vmatprep.subr.mxu0 0.0
    %190 = vmatpush1.msra.mxu0 0.0
    %191 = vmatprep.subr.mxu0 0.0
    %192 = vmatpush1.msra.mxu0 0.0
    %193 = vmatprep.subr.mxu0 0.0
    %194 = vmatpush1.msra.mxu0 0.0
    %195 = vmatprep.subr.mxu0 0.0
    %196 = vmatpush1.msra.mxu0 0.0
    %197 = vmatprep.subr.mxu0 0.0
    %198 = vmatpush1.msra.mxu0 0.0
    %199 = vmatprep.subr.mxu0 0.0
    %200 = vmatpush1.msra.mxu0 0.0
    %201 = vmatprep.subr.mxu0 0.0
    %202 = vmatpush1.msra.mxu0 0.0
    %203 = vmatprep.subr.mxu0 0.0
    %204 = vmatpush1.msra.mxu0 0.0
    %205 = vmatprep.subr.mxu0 0.0
    %206 = vmatpush1.msra.mxu0 0.0
    %207 = vmatprep.subr.mxu0 0.0
    %208 = vmatpush1.msra.mxu0 0.0
    %209 = vmatprep.subr.mxu0 0.0
    %210 = vmatpush1.msra.mxu0 0.0
    %211 = vmatprep.subr.mxu0 0.0
    %212 = vmatpush1.msra.mxu0 0.0
    %213 = vmatprep.subr.mxu0 0.0
    %214 = vmatpush1.msra.mxu0 0.0
    %215 = vmatprep.subr.mxu0 0.0
    %216 = vmatpush1.msra.mxu0 0.0
    %217 = vmatprep.subr.mxu0 0.0
    %218 = vmatpush1.msra.mxu0 0.0
    %219 = vmatprep.subr.mxu0 0.0
    %220 = vmatpush1.msra.mxu0 0.0
    %221 = vmatprep.subr.mxu0 0.0
    %222 = vmatpush1.msra.mxu0 0.0
    %223 = vmatprep.subr.mxu0 0.0
    %224 = vmatpush1.msra.mxu0 0.0
    %225 = vmatprep.subr.mxu0 0.0
    %226 = vmatpush1.msra.mxu0 0.0
    %227 = vmatprep.subr.mxu0 0.0
    %228 = vmatpush1.msra.mxu0 0.0
    %229 = vmatprep.mubr.f32.mxu0 0.0
    %230 = vmatmul.mubr.f32.gmra.mrb[0].mxu0 %v163
    %v231 = vpop.f32.mrb[0].mxu0
    %v232 = vadd.f32 0.0, %v231
    %v233 = vpop.f32.mrb[0].mxu0
    %234 = vdwg.mxu0
    %v236 = vrot.slane %v232, 7
    %v239 = vadd.f32 %v111, %v236
    %v240 = vadd.f32 %v116, %v232
    %v241 = vxor.u32 %v239, 2147483648
    %v242 = vxor.u32 %v240, 2147483648
    %v243 = vmul.f32 %v241, 1.442695
    %v244 = vpow.pop %v243
    %v245 = vmul.f32 %v242, 1.442695
    %v246 = vpow.pop %v245
    %v247 = vadd.f32 %v244, 1.0
    %v248 = vadd.f32 %v246, 1.0
    %v249 = vrcp.pop %v247
    %v250 = vmul.f32 1.0, %v249
    %v251 = vrcp.pop %v248
    %v252 = vmul.f32 1.0, %v251
    %v253 = vtanh.pop %v239
    %v254 = vtanh.pop %v240
    %v257 = vrot.slane %v141, 7
    %v258 = vrot.slane %v142, 7
    %259 = vrot.lane.b32.xlu0 %v257, 32
    %v260 = vpop.permute.xlu0 %259
    %261 = vrot.lane.b32.xlu0 %v258, 32
    %v262 = vpop.permute.xlu0 %261
    %v265 = vmul.f32 %v250, %v260
    %v266 = vmul.f32 %v252, %v262
    %269 = vrot.lane.b32.xlu0 %v253, 32
    %v270 = vpop.permute.xlu0 %269
    %271 = vrot.lane.b32.xlu0 %v254, 32
    %v272 = vpop.permute.xlu0 %271
    %v275 = vmul.f32 %v250, %v270
    %v276 = vmul.f32 %v252, %v272
    %279 = vrot.lane.b32.xlu0 %v275, 32
    %v280 = vpop.permute.xlu0 %279
    %281 = vrot.lane.b32.xlu0 %v276, 32
    %v282 = vpop.permute.xlu0 %281
    %v285 = vadd.f32 %v265, %v280
    %v286 = vadd.f32 %v266, %v282
    %v287 = vtanh.pop %v285
    %v288 = vtanh.pop %v286
    %291 = vrot.lane.b32.xlu0 %v287, 32
    %v292 = vpop.permute.xlu0 %291
    %293 = vrot.lane.b32.xlu0 %v288, 32
    %v294 = vpop.permute.xlu0 %293
    %v297 = vmul.f32 %v250, %v292
    %v298 = vmul.f32 %v252, %v294
    %v301 = vrot.slane %v297, 1
    %v302 = vsel %vm158, %v298, %v301
    %303 = vrot.lane.b32.xlu0 %v302, 64
    %v304 = vpop.permute.xlu0 %303
    %v305 = vsel %vm162, %v304, 0
    %307 = vmatprep.subr.mxu0 0.0
    %308 = vmatpush1.msra.mxu0 %v22
    %309 = vmatprep.subr.mxu0 0.0
    %310 = vmatpush1.msra.mxu0 %v23
    %311 = vmatprep.subr.mxu0 0.0
    %312 = vmatpush1.msra.mxu0 %v24
    %313 = vmatprep.subr.mxu0 0.0
    %314 = vmatpush1.msra.mxu0 %v25
    %315 = vmatprep.subr.mxu0 0.0
    %316 = vmatpush1.msra.mxu0 0.0
    %317 = vmatprep.subr.mxu0 0.0
    %318 = vmatpush1.msra.mxu0 0.0
    %319 = vmatprep.subr.mxu0 0.0
    %320 = vmatpush1.msra.mxu0 0.0
    %321 = vmatprep.subr.mxu0 0.0
    %322 = vmatpush1.msra.mxu0 0.0
    %323 = vmatprep.subr.mxu0 0.0
    %324 = vmatpush1.msra.mxu0 0.0
    %325 = vmatprep.subr.mxu0 0.0
    %326 = vmatpush1.msra.mxu0 0.0
    %327 = vmatprep.subr.mxu0 0.0
    %328 = vmatpush1.msra.mxu0 0.0
    %329 = vmatprep.subr.mxu0 0.0
    %330 = vmatpush1.msra.mxu0 0.0
    %331 = vmatprep.subr.mxu0 0.0
    %332 = vmatpush1.msra.mxu0 0.0
    %333 = vmatprep.subr.mxu0 0.0
    %334 = vmatpush1.msra.mxu0 0.0
    %335 = vmatprep.subr.mxu0 0.0
    %336 = vmatpush1.msra.mxu0 0.0
    %337 = vmatprep.subr.mxu0 0.0
    %338 = vmatpush1.msra.mxu0 0.0
    %339 = vmatprep.subr.mxu0 0.0
    %340 = vmatpush1.msra.mxu0 0.0
    %341 = vmatprep.subr.mxu0 0.0
    %342 = vmatpush1.msra.mxu0 0.0
    %343 = vmatprep.subr.mxu0 0.0
    %344 = vmatpush1.msra.mxu0 0.0
    %345 = vmatprep.subr.mxu0 0.0
    %346 = vmatpush1.msra.mxu0 0.0
    %347 = vmatprep.subr.mxu0 0.0
    %348 = vmatpush1.msra.mxu0 0.0
    %349 = vmatprep.subr.mxu0 0.0
    %350 = vmatpush1.msra.mxu0 0.0
    %351 = vmatprep.subr.mxu0 0.0
    %352 = vmatpush1.msra.mxu0 0.0
    %353 = vmatprep.subr.mxu0 0.0
    %354 = vmatpush1.msra.mxu0 0.0
    %355 = vmatprep.subr.mxu0 0.0
    %356 = vmatpush1.msra.mxu0 0.0
    %357 = vmatprep.subr.mxu0 0.0
    %358 = vmatpush1.msra.mxu0 0.0
    %359 = vmatprep.subr.mxu0 0.0
    %360 = vmatpush1.msra.mxu0 0.0
    %361 = vmatprep.subr.mxu0 0.0
    %362 = vmatpush1.msra.mxu0 0.0
    %363 = vmatprep.subr.mxu0 0.0
    %364 = vmatpush1.msra.mxu0 0.0
    %365 = vmatprep.subr.mxu0 0.0
    %366 = vmatpush1.msra.mxu0 0.0
    %367 = vmatprep.subr.mxu0 0.0
    %368 = vmatpush1.msra.mxu0 0.0
    %369 = vmatprep.subr.mxu0 0.0
    %370 = vmatpush1.msra.mxu0 0.0
    %371 = vmatprep.mubr.f32.mxu0 0.0
    %372 = vmatmul.mubr.f32.gmra.mrb[0].mxu0 %v305
    %v373 = vpop.f32.mrb[0].mxu0
    %v374 = vadd.f32 0.0, %v373
    %v375 = vpop.f32.mrb[0].mxu0
    %376 = vdwg.mxu0
    %v378 = vrot.slane %v374, 6
    %v379 = vrot.slane %v374, 7
    %v382 = vadd.f32 %v111, %v378
    %v383 = vadd.f32 %v116, %v379
    %v384 = vxor.u32 %v382, 2147483648
    %v385 = vxor.u32 %v383, 2147483648
    %v386 = vmul.f32 %v384, 1.442695
    %v387 = vpow.pop %v386
    %v388 = vmul.f32 %v385, 1.442695
    %v389 = vpow.pop %v388
    %v390 = vadd.f32 %v387, 1.0
    %v391 = vadd.f32 %v389, 1.0
    %v392 = vrcp.pop %v390
    %v393 = vmul.f32 1.0, %v392
    %v394 = vrcp.pop %v391
    %v395 = vmul.f32 1.0, %v394
    %v396 = vtanh.pop %v382
    %v397 = vtanh.pop %v383
    %v400 = vrot.slane %v285, 7
    %v401 = vrot.slane %v286, 7
    %v404 = vmul.f32 %v393, %v400
    %v405 = vmul.f32 %v395, %v401
    %408 = vrot.lane.b32.xlu0 %v396, 32
    %v409 = vpop.permute.xlu0 %408
    %410 = vrot.lane.b32.xlu0 %v397, 32
    %v411 = vpop.permute.xlu0 %410
    %v414 = vmul.f32 %v393, %v409
    %v415 = vmul.f32 %v395, %v411
    %418 = vrot.lane.b32.xlu0 %v414, 32
    %v419 = vpop.permute.xlu0 %418
    %420 = vrot.lane.b32.xlu0 %v415, 32
    %v421 = vpop.permute.xlu0 %420
    %v424 = vadd.f32 %v404, %v419
    %v425 = vadd.f32 %v405, %v421
    %v426 = vtanh.pop %v424
    %v427 = vtanh.pop %v425
    %430 = vrot.lane.b32.xlu0 %v426, 32
    %v431 = vpop.permute.xlu0 %430
    %432 = vrot.lane.b32.xlu0 %v427, 32
    %v433 = vpop.permute.xlu0 %432
    %v436 = vmul.f32 %v393, %v431
    %v437 = vmul.f32 %v395, %v433
    %v440 = vrot.slane %v436, 2
    %v441 = vrot.slane %v437, 1
    %v442 = vsel %vm158, %v441, %v440
    %443 = vrot.lane.b32.xlu0 %v442, 64
    %v444 = vpop.permute.xlu0 %443
    %v445 = vsel %vm162, %v444, 0
    %447 = vmatprep.subr.mxu0 0.0
    %448 = vmatpush1.msra.mxu0 %v22
    %449 = vmatprep.subr.mxu0 0.0
    %450 = vmatpush1.msra.mxu0 %v23
    %451 = vmatprep.subr.mxu0 0.0
    %452 = vmatpush1.msra.mxu0 %v24
    %453 = vmatprep.subr.mxu0 0.0
    %454 = vmatpush1.msra.mxu0 %v25
    %455 = vmatprep.subr.mxu0 0.0
    %456 = vmatpush1.msra.mxu0 0.0
    %457 = vmatprep.subr.mxu0 0.0
    %458 = vmatpush1.msra.mxu0 0.0
    %459 = vmatprep.subr.mxu0 0.0
    %460 = vmatpush1.msra.mxu0 0.0
    %461 = vmatprep.subr.mxu0 0.0
    %462 = vmatpush1.msra.mxu0 0.0
    %463 = vmatprep.subr.mxu0 0.0
    %464 = vmatpush1.msra.mxu0 0.0
    %465 = vmatprep.subr.mxu0 0.0
    %466 = vmatpush1.msra.mxu0 0.0
    %467 = vmatprep.subr.mxu0 0.0
    %468 = vmatpush1.msra.mxu0 0.0
    %469 = vmatprep.subr.mxu0 0.0
    %470 = vmatpush1.msra.mxu0 0.0
    %471 = vmatprep.subr.mxu0 0.0
    %472 = vmatpush1.msra.mxu0 0.0
    %473 = vmatprep.subr.mxu0 0.0
    %474 = vmatpush1.msra.mxu0 0.0
    %475 = vmatprep.subr.mxu0 0.0
    %476 = vmatpush1.msra.mxu0 0.0
    %477 = vmatprep.subr.mxu0 0.0
    %478 = vmatpush1.msra.mxu0 0.0
    %479 = vmatprep.subr.mxu0 0.0
    %480 = vmatpush1.msra.mxu0 0.0
    %481 = vmatprep.subr.mxu0 0.0
    %482 = vmatpush1.msra.mxu0 0.0
    %483 = vmatprep.subr.mxu0 0.0
    %484 = vmatpush1.msra.mxu0 0.0
    %485 = vmatprep.subr.mxu0 0.0
    %486 = vmatpush1.msra.mxu0 0.0
    %487 = vmatprep.subr.mxu0 0.0
    %488 = vmatpush1.msra.mxu0 0.0
    %489 = vmatprep.subr.mxu0 0.0
    %490 = vmatpush1.msra.mxu0 0.0
    %491 = vmatprep.subr.mxu0 0.0
    %492 = vmatpush1.msra.mxu0 0.0
    %493 = vmatprep.subr.mxu0 0.0
    %494 = vmatpush1.msra.mxu0 0.0
    %495 = vmatprep.subr.mxu0 0.0
    %496 = vmatpush1.msra.mxu0 0.0
    %497 = vmatprep.subr.mxu0 0.0
    %498 = vmatpush1.msra.mxu0 0.0
    %499 = vmatprep.subr.mxu0 0.0
    %500 = vmatpush1.msra.mxu0 0.0
    %501 = vmatprep.subr.mxu0 0.0
    %502 = vmatpush1.msra.mxu0 0.0
    %503 = vmatprep.subr.mxu0 0.0
    %504 = vmatpush1.msra.mxu0 0.0
    %505 = vmatprep.subr.mxu0 0.0
    %506 = vmatpush1.msra.mxu0 0.0
    %507 = vmatprep.subr.mxu0 0.0
    %508 = vmatpush1.msra.mxu0 0.0
    %509 = vmatprep.subr.mxu0 0.0
    %510 = vmatpush1.msra.mxu0 0.0
    %511 = vmatprep.mubr.f32.mxu0 0.0
    %512 = vmatmul.mubr.f32.gmra.mrb[0].mxu0 %v445
    %v513 = vpop.f32.mrb[0].mxu0
    %v514 = vadd.f32 0.0, %v513
    %v515 = vpop.f32.mrb[0].mxu0
    %516 = vdwg.mxu0
    %v518 = vrot.slane %v514, 5
    %v519 = vrot.slane %v514, 6
    %v522 = vadd.f32 %v111, %v518
    %v523 = vadd.f32 %v116, %v519
    %v524 = vxor.u32 %v522, 2147483648
    %v525 = vxor.u32 %v523, 2147483648
    %v526 = vmul.f32 %v524, 1.442695
    %v527 = vpow.pop %v526
    %v528 = vmul.f32 %v525, 1.442695
    %v529 = vpow.pop %v528
    %v530 = vadd.f32 %v527, 1.0
    %v531 = vadd.f32 %v529, 1.0
    %v532 = vrcp.pop %v530
    %v533 = vmul.f32 1.0, %v532
    %v534 = vrcp.pop %v531
    %v535 = vmul.f32 1.0, %v534
    %v536 = vtanh.pop %v522
    %v537 = vtanh.pop %v523
    %v540 = vrot.slane %v424, 7
    %v541 = vrot.slane %v425, 7
    %v544 = vmul.f32 %v533, %v540
    %v545 = vmul.f32 %v535, %v541
    %548 = vrot.lane.b32.xlu0 %v536, 32
    %v549 = vpop.permute.xlu0 %548
    %550 = vrot.lane.b32.xlu0 %v537, 32
    %v551 = vpop.permute.xlu0 %550
    %v554 = vmul.f32 %v533, %v549
    %v555 = vmul.f32 %v535, %v551
    %558 = vrot.lane.b32.xlu0 %v554, 32
    %v559 = vpop.permute.xlu0 %558
    %560 = vrot.lane.b32.xlu0 %v555, 32
    %v561 = vpop.permute.xlu0 %560
    %v564 = vadd.f32 %v544, %v559
    %v565 = vadd.f32 %v545, %v561
    %v566 = vtanh.pop %v564
    %v567 = vtanh.pop %v565
    %570 = vrot.lane.b32.xlu0 %v566, 32
    %v571 = vpop.permute.xlu0 %570
    %572 = vrot.lane.b32.xlu0 %v567, 32
    %v573 = vpop.permute.xlu0 %572
    %v576 = vmul.f32 %v533, %v571
    %v577 = vmul.f32 %v535, %v573
    %v580 = vrot.slane %v576, 3
    %v581 = vrot.slane %v577, 2
    %v582 = vsel %vm158, %v581, %v580
    %583 = vrot.lane.b32.xlu0 %v582, 64
    %v584 = vpop.permute.xlu0 %583
    %v585 = vsel %vm162, %v584, 0
    %587 = vmatprep.subr.mxu0 0.0
    %588 = vmatpush1.msra.mxu0 %v22
    %589 = vmatprep.subr.mxu0 0.0
    %590 = vmatpush1.msra.mxu0 %v23
    %591 = vmatprep.subr.mxu0 0.0
    %592 = vmatpush1.msra.mxu0 %v24
    %593 = vmatprep.subr.mxu0 0.0
    %594 = vmatpush1.msra.mxu0 %v25
    %595 = vmatprep.subr.mxu0 0.0
    %596 = vmatpush1.msra.mxu0 0.0
    %597 = vmatprep.subr.mxu0 0.0
    %598 = vmatpush1.msra.mxu0 0.0
    %599 = vmatprep.subr.mxu0 0.0
    %600 = vmatpush1.msra.mxu0 0.0
    %601 = vmatprep.subr.mxu0 0.0
    %602 = vmatpush1.msra.mxu0 0.0
    %603 = vmatprep.subr.mxu0 0.0
    %604 = vmatpush1.msra.mxu0 0.0
    %605 = vmatprep.subr.mxu0 0.0
    %606 = vmatpush1.msra.mxu0 0.0
    %607 = vmatprep.subr.mxu0 0.0
    %608 = vmatpush1.msra.mxu0 0.0
    %609 = vmatprep.subr.mxu0 0.0
    %610 = vmatpush1.msra.mxu0 0.0
    %611 = vmatprep.subr.mxu0 0.0
    %612 = vmatpush1.msra.mxu0 0.0
    %613 = vmatprep.subr.mxu0 0.0
    %614 = vmatpush1.msra.mxu0 0.0
    %615 = vmatprep.subr.mxu0 0.0
    %616 = vmatpush1.msra.mxu0 0.0
    %617 = vmatprep.subr.mxu0 0.0
    %618 = vmatpush1.msra.mxu0 0.0
    %619 = vmatprep.subr.mxu0 0.0
    %620 = vmatpush1.msra.mxu0 0.0
    %621 = vmatprep.subr.mxu0 0.0
    %622 = vmatpush1.msra.mxu0 0.0
    %623 = vmatprep.subr.mxu0 0.0
    %624 = vmatpush1.msra.mxu0 0.0
    %625 = vmatprep.subr.mxu0 0.0
    %626 = vmatpush1.msra.mxu0 0.0
    %627 = vmatprep.subr.mxu0 0.0
    %628 = vmatpush1.msra.mxu0 0.0
    %629 = vmatprep.subr.mxu0 0.0
    %630 = vmatpush1.msra.mxu0 0.0
    %631 = vmatprep.subr.mxu0 0.0
    %632 = vmatpush1.msra.mxu0 0.0
    %633 = vmatprep.subr.mxu0 0.0
    %634 = vmatpush1.msra.mxu0 0.0
    %635 = vmatprep.subr.mxu0 0.0
    %636 = vmatpush1.msra.mxu0 0.0
    %637 = vmatprep.subr.mxu0 0.0
    %638 = vmatpush1.msra.mxu0 0.0
    %639 = vmatprep.subr.mxu0 0.0
    %640 = vmatpush1.msra.mxu0 0.0
    %641 = vmatprep.subr.mxu0 0.0
    %642 = vmatpush1.msra.mxu0 0.0
    %643 = vmatprep.subr.mxu0 0.0
    %644 = vmatpush1.msra.mxu0 0.0
    %645 = vmatprep.subr.mxu0 0.0
    %646 = vmatpush1.msra.mxu0 0.0
    %647 = vmatprep.subr.mxu0 0.0
    %648 = vmatpush1.msra.mxu0 0.0
    %649 = vmatprep.subr.mxu0 0.0
    %650 = vmatpush1.msra.mxu0 0.0
    %651 = vmatprep.mubr.f32.mxu0 0.0
    %652 = vmatmul.mubr.f32.gmra.mrb[0].mxu0 %v585
    %v653 = vpop.f32.mrb[0].mxu0
    %v654 = vadd.f32 0.0, %v653
    %v655 = vpop.f32.mrb[0].mxu0
    %656 = vdwg.mxu0
    %v658 = vrot.slane %v654, 4
    %v659 = vrot.slane %v654, 5
    %v662 = vadd.f32 %v111, %v658
    %v663 = vadd.f32 %v116, %v659
    %v664 = vxor.u32 %v662, 2147483648
    %v665 = vxor.u32 %v663, 2147483648
    %v666 = vmul.f32 %v664, 1.442695
    %v667 = vpow.pop %v666
    %v668 = vmul.f32 %v665, 1.442695
    %v669 = vpow.pop %v668
    %v670 = vadd.f32 %v667, 1.0
    %v671 = vadd.f32 %v669, 1.0
    %v672 = vrcp.pop %v670
    %v673 = vmul.f32 1.0, %v672
    %v674 = vrcp.pop %v671
    %v675 = vmul.f32 1.0, %v674
    %v676 = vtanh.pop %v662
    %v677 = vtanh.pop %v663
    %v680 = vrot.slane %v564, 7
    %v681 = vrot.slane %v565, 7
    %v684 = vmul.f32 %v673, %v680
    %v685 = vmul.f32 %v675, %v681
    %688 = vrot.lane.b32.xlu0 %v676, 32
    %v689 = vpop.permute.xlu0 %688
    %690 = vrot.lane.b32.xlu0 %v677, 32
    %v691 = vpop.permute.xlu0 %690
    %v694 = vmul.f32 %v673, %v689
    %v695 = vmul.f32 %v675, %v691
    %698 = vrot.lane.b32.xlu0 %v694, 32
    %v699 = vpop.permute.xlu0 %698
    %700 = vrot.lane.b32.xlu0 %v695, 32
    %v701 = vpop.permute.xlu0 %700
    %v704 = vadd.f32 %v684, %v699
    %v705 = vadd.f32 %v685, %v701
    %v706 = vtanh.pop %v704
    %v707 = vtanh.pop %v705
    %710 = vrot.lane.b32.xlu0 %v706, 32
    %v711 = vpop.permute.xlu0 %710
    %712 = vrot.lane.b32.xlu0 %v707, 32
    %v713 = vpop.permute.xlu0 %712
    %v716 = vmul.f32 %v673, %v711
    %v717 = vmul.f32 %v675, %v713
    %v720 = vrot.slane %v716, 4
    %v721 = vrot.slane %v717, 3
    %v722 = vsel %vm158, %v721, %v720
    %723 = vrot.lane.b32.xlu0 %v722, 64
    %v724 = vpop.permute.xlu0 %723
    %v725 = vsel %vm162, %v724, 0
    %727 = vmatprep.subr.mxu0 0.0
    %728 = vmatpush1.msra.mxu0 %v22
    %729 = vmatprep.subr.mxu0 0.0
    %730 = vmatpush1.msra.mxu0 %v23
    %731 = vmatprep.subr.mxu0 0.0
    %732 = vmatpush1.msra.mxu0 %v24
    %733 = vmatprep.subr.mxu0 0.0
    %734 = vmatpush1.msra.mxu0 %v25
    %735 = vmatprep.subr.mxu0 0.0
    %736 = vmatpush1.msra.mxu0 0.0
    %737 = vmatprep.subr.mxu0 0.0
    %738 = vmatpush1.msra.mxu0 0.0
    %739 = vmatprep.subr.mxu0 0.0
    %740 = vmatpush1.msra.mxu0 0.0
    %741 = vmatprep.subr.mxu0 0.0
    %742 = vmatpush1.msra.mxu0 0.0
    %743 = vmatprep.subr.mxu0 0.0
    %744 = vmatpush1.msra.mxu0 0.0
    %745 = vmatprep.subr.mxu0 0.0
    %746 = vmatpush1.msra.mxu0 0.0
    %747 = vmatprep.subr.mxu0 0.0
    %748 = vmatpush1.msra.mxu0 0.0
    %749 = vmatprep.subr.mxu0 0.0
    %750 = vmatpush1.msra.mxu0 0.0
    %751 = vmatprep.subr.mxu0 0.0
    %752 = vmatpush1.msra.mxu0 0.0
    %753 = vmatprep.subr.mxu0 0.0
    %754 = vmatpush1.msra.mxu0 0.0
    %755 = vmatprep.subr.mxu0 0.0
    %756 = vmatpush1.msra.mxu0 0.0
    %757 = vmatprep.subr.mxu0 0.0
    %758 = vmatpush1.msra.mxu0 0.0
    %759 = vmatprep.subr.mxu0 0.0
    %760 = vmatpush1.msra.mxu0 0.0
    %761 = vmatprep.subr.mxu0 0.0
    %762 = vmatpush1.msra.mxu0 0.0
    %763 = vmatprep.subr.mxu0 0.0
    %764 = vmatpush1.msra.mxu0 0.0
    %765 = vmatprep.subr.mxu0 0.0
    %766 = vmatpush1.msra.mxu0 0.0
    %767 = vmatprep.subr.mxu0 0.0
    %768 = vmatpush1.msra.mxu0 0.0
    %769 = vmatprep.subr.mxu0 0.0
    %770 = vmatpush1.msra.mxu0 0.0
    %771 = vmatprep.subr.mxu0 0.0
    %772 = vmatpush1.msra.mxu0 0.0
    %773 = vmatprep.subr.mxu0 0.0
    %774 = vmatpush1.msra.mxu0 0.0
    %775 = vmatprep.subr.mxu0 0.0
    %776 = vmatpush1.msra.mxu0 0.0
    %777 = vmatprep.subr.mxu0 0.0
    %778 = vmatpush1.msra.mxu0 0.0
    %779 = vmatprep.subr.mxu0 0.0
    %780 = vmatpush1.msra.mxu0 0.0
    %781 = vmatprep.subr.mxu0 0.0
    %782 = vmatpush1.msra.mxu0 0.0
    %783 = vmatprep.subr.mxu0 0.0
    %784 = vmatpush1.msra.mxu0 0.0
    %785 = vmatprep.subr.mxu0 0.0
    %786 = vmatpush1.msra.mxu0 0.0
    %787 = vmatprep.subr.mxu0 0.0
    %788 = vmatpush1.msra.mxu0 0.0
    %789 = vmatprep.subr.mxu0 0.0
    %790 = vmatpush1.msra.mxu0 0.0
    %791 = vmatprep.mubr.f32.mxu0 0.0
    %792 = vmatmul.mubr.f32.gmra.mrb[0].mxu0 %v725
    %v793 = vpop.f32.mrb[0].mxu0
    %v794 = vadd.f32 0.0, %v793
    %v795 = vpop.f32.mrb[0].mxu0
    %796 = vdwg.mxu0
    %v798 = vrot.slane %v794, 3
    %v799 = vrot.slane %v794, 4
    %v802 = vadd.f32 %v111, %v798
    %v803 = vadd.f32 %v116, %v799
    %v804 = vxor.u32 %v802, 2147483648
    %v805 = vxor.u32 %v803, 2147483648
    %v806 = vmul.f32 %v804, 1.442695
    %v807 = vpow.pop %v806
    %v808 = vmul.f32 %v805, 1.442695
    %v809 = vpow.pop %v808
    %v810 = vadd.f32 %v807, 1.0
    %v811 = vadd.f32 %v809, 1.0
    %v812 = vrcp.pop %v810
    %v813 = vmul.f32 1.0, %v812
    %v814 = vrcp.pop %v811
    %v815 = vmul.f32 1.0, %v814
    %v816 = vtanh.pop %v802
    %v817 = vtanh.pop %v803
    %v820 = vrot.slane %v704, 7
    %v821 = vrot.slane %v705, 7
    %v824 = vmul.f32 %v813, %v820
    %v825 = vmul.f32 %v815, %v821
    %828 = vrot.lane.b32.xlu0 %v816, 32
    %v829 = vpop.permute.xlu0 %828
    %830 = vrot.lane.b32.xlu0 %v817, 32
    %v831 = vpop.permute.xlu0 %830
    %v834 = vmul.f32 %v813, %v829
    %v835 = vmul.f32 %v815, %v831
    %838 = vrot.lane.b32.xlu0 %v834, 32
    %v839 = vpop.permute.xlu0 %838
    %840 = vrot.lane.b32.xlu0 %v835, 32
    %v841 = vpop.permute.xlu0 %840
    %v844 = vadd.f32 %v824, %v839
    %v845 = vadd.f32 %v825, %v841
    %v846 = vtanh.pop %v844
    %v847 = vtanh.pop %v845
    %850 = vrot.lane.b32.xlu0 %v846, 32
    %v851 = vpop.permute.xlu0 %850
    %852 = vrot.lane.b32.xlu0 %v847, 32
    %v853 = vpop.permute.xlu0 %852
    %v856 = vmul.f32 %v813, %v851
    %v857 = vmul.f32 %v815, %v853
    %v860 = vrot.slane %v856, 5
    %v861 = vrot.slane %v857, 4
    %v862 = vsel %vm158, %v861, %v860
    %863 = vrot.lane.b32.xlu0 %v862, 64
    %v864 = vpop.permute.xlu0 %863
    %v865 = vsel %vm162, %v864, 0
    %867 = vmatprep.subr.mxu0 0.0
    %868 = vmatpush1.msra.mxu0 %v22
    %869 = vmatprep.subr.mxu0 0.0
    %870 = vmatpush1.msra.mxu0 %v23
    %871 = vmatprep.subr.mxu0 0.0
    %872 = vmatpush1.msra.mxu0 %v24
    %873 = vmatprep.subr.mxu0 0.0
    %874 = vmatpush1.msra.mxu0 %v25
    %875 = vmatprep.subr.mxu0 0.0
    %876 = vmatpush1.msra.mxu0 0.0
    %877 = vmatprep.subr.mxu0 0.0
    %878 = vmatpush1.msra.mxu0 0.0
    %879 = vmatprep.subr.mxu0 0.0
    %880 = vmatpush1.msra.mxu0 0.0
    %881 = vmatprep.subr.mxu0 0.0
    %882 = vmatpush1.msra.mxu0 0.0
    %883 = vmatprep.subr.mxu0 0.0
    %884 = vmatpush1.msra.mxu0 0.0
    %885 = vmatprep.subr.mxu0 0.0
    %886 = vmatpush1.msra.mxu0 0.0
    %887 = vmatprep.subr.mxu0 0.0
    %888 = vmatpush1.msra.mxu0 0.0
    %889 = vmatprep.subr.mxu0 0.0
    %890 = vmatpush1.msra.mxu0 0.0
    %891 = vmatprep.subr.mxu0 0.0
    %892 = vmatpush1.msra.mxu0 0.0
    %893 = vmatprep.subr.mxu0 0.0
    %894 = vmatpush1.msra.mxu0 0.0
    %895 = vmatprep.subr.mxu0 0.0
    %896 = vmatpush1.msra.mxu0 0.0
    %897 = vmatprep.subr.mxu0 0.0
    %898 = vmatpush1.msra.mxu0 0.0
    %899 = vmatprep.subr.mxu0 0.0
    %900 = vmatpush1.msra.mxu0 0.0
    %901 = vmatprep.subr.mxu0 0.0
    %902 = vmatpush1.msra.mxu0 0.0
    %903 = vmatprep.subr.mxu0 0.0
    %904 = vmatpush1.msra.mxu0 0.0
    %905 = vmatprep.subr.mxu0 0.0
    %906 = vmatpush1.msra.mxu0 0.0
    %907 = vmatprep.subr.mxu0 0.0
    %908 = vmatpush1.msra.mxu0 0.0
    %909 = vmatprep.subr.mxu0 0.0
    %910 = vmatpush1.msra.mxu0 0.0
    %911 = vmatprep.subr.mxu0 0.0
    %912 = vmatpush1.msra.mxu0 0.0
    %913 = vmatprep.subr.mxu0 0.0
    %914 = vmatpush1.msra.mxu0 0.0
    %915 = vmatprep.subr.mxu0 0.0
    %916 = vmatpush1.msra.mxu0 0.0
    %917 = vmatprep.subr.mxu0 0.0
    %918 = vmatpush1.msra.mxu0 0.0
    %919 = vmatprep.subr.mxu0 0.0
    %920 = vmatpush1.msra.mxu0 0.0
    %921 = vmatprep.subr.mxu0 0.0
    %922 = vmatpush1.msra.mxu0 0.0
    %923 = vmatprep.subr.mxu0 0.0
    %924 = vmatpush1.msra.mxu0 0.0
    %925 = vmatprep.subr.mxu0 0.0
    %926 = vmatpush1.msra.mxu0 0.0
    %927 = vmatprep.subr.mxu0 0.0
    %928 = vmatpush1.msra.mxu0 0.0
    %929 = vmatprep.subr.mxu0 0.0
    %930 = vmatpush1.msra.mxu0 0.0
    %931 = vmatprep.mubr.f32.mxu0 0.0
    %932 = vmatmul.mubr.f32.gmra.mrb[0].mxu0 %v865
    %v933 = vpop.f32.mrb[0].mxu0
    %v934 = vadd.f32 0.0, %v933
    %v935 = vpop.f32.mrb[0].mxu0
    %936 = vdwg.mxu0
    %v938 = vrot.slane %v934, 2
    %v939 = vrot.slane %v934, 3
    %v942 = vadd.f32 %v111, %v938
    %v943 = vadd.f32 %v116, %v939
    %v944 = vxor.u32 %v942, 2147483648
    %v945 = vxor.u32 %v943, 2147483648
    %v946 = vmul.f32 %v944, 1.442695
    %v947 = vpow.pop %v946
    %v948 = vmul.f32 %v945, 1.442695
    %v949 = vpow.pop %v948
    %v950 = vadd.f32 %v947, 1.0
    %v951 = vadd.f32 %v949, 1.0
    %v952 = vrcp.pop %v950
    %v953 = vmul.f32 1.0, %v952
    %v954 = vrcp.pop %v951
    %v955 = vmul.f32 1.0, %v954
    %v956 = vtanh.pop %v942
    %v957 = vtanh.pop %v943
    %v960 = vrot.slane %v844, 7
    %v961 = vrot.slane %v845, 7
    %v964 = vmul.f32 %v953, %v960
    %v965 = vmul.f32 %v955, %v961
    %968 = vrot.lane.b32.xlu0 %v956, 32
    %v969 = vpop.permute.xlu0 %968
    %970 = vrot.lane.b32.xlu0 %v957, 32
    %v971 = vpop.permute.xlu0 %970
    %v974 = vmul.f32 %v953, %v969
    %v975 = vmul.f32 %v955, %v971
    %978 = vrot.lane.b32.xlu0 %v974, 32
    %v979 = vpop.permute.xlu0 %978
    %980 = vrot.lane.b32.xlu0 %v975, 32
    %v981 = vpop.permute.xlu0 %980
    %v984 = vadd.f32 %v964, %v979
    %v985 = vadd.f32 %v965, %v981
    %v986 = vtanh.pop %v984
    %v987 = vtanh.pop %v985
    %990 = vrot.lane.b32.xlu0 %v986, 32
    %v991 = vpop.permute.xlu0 %990
    %992 = vrot.lane.b32.xlu0 %v987, 32
    %v993 = vpop.permute.xlu0 %992
    %v996 = vmul.f32 %v953, %v991
    %v997 = vmul.f32 %v955, %v993
    %v1000 = vrot.slane %v996, 6
    %v1001 = vrot.slane %v997, 5
    %v1002 = vsel %vm158, %v1001, %v1000
    %1003 = vrot.lane.b32.xlu0 %v1002, 64
    %v1004 = vpop.permute.xlu0 %1003
    %v1005 = vsel %vm162, %v1004, 0
    %1007 = vmatprep.subr.mxu0 0.0
    %1008 = vmatpush1.msra.mxu0 %v22
    %1009 = vmatprep.subr.mxu0 0.0
    %1010 = vmatpush1.msra.mxu0 %v23
    %1011 = vmatprep.subr.mxu0 0.0
    %1012 = vmatpush1.msra.mxu0 %v24
    %1013 = vmatprep.subr.mxu0 0.0
    %1014 = vmatpush1.msra.mxu0 %v25
    %1015 = vmatprep.subr.mxu0 0.0
    %1016 = vmatpush1.msra.mxu0 0.0
    %1017 = vmatprep.subr.mxu0 0.0
    %1018 = vmatpush1.msra.mxu0 0.0
    %1019 = vmatprep.subr.mxu0 0.0
    %1020 = vmatpush1.msra.mxu0 0.0
    %1021 = vmatprep.subr.mxu0 0.0
    %1022 = vmatpush1.msra.mxu0 0.0
    %1023 = vmatprep.subr.mxu0 0.0
    %1024 = vmatpush1.msra.mxu0 0.0
    %1025 = vmatprep.subr.mxu0 0.0
    %1026 = vmatpush1.msra.mxu0 0.0
    %1027 = vmatprep.subr.mxu0 0.0
    %1028 = vmatpush1.msra.mxu0 0.0
    %1029 = vmatprep.subr.mxu0 0.0
    %1030 = vmatpush1.msra.mxu0 0.0
    %1031 = vmatprep.subr.mxu0 0.0
    %1032 = vmatpush1.msra.mxu0 0.0
    %1033 = vmatprep.subr.mxu0 0.0
    %1034 = vmatpush1.msra.mxu0 0.0
    %1035 = vmatprep.subr.mxu0 0.0
    %1036 = vmatpush1.msra.mxu0 0.0
    %1037 = vmatprep.subr.mxu0 0.0
    %1038 = vmatpush1.msra.mxu0 0.0
    %1039 = vmatprep.subr.mxu0 0.0
    %1040 = vmatpush1.msra.mxu0 0.0
    %1041 = vmatprep.subr.mxu0 0.0
    %1042 = vmatpush1.msra.mxu0 0.0
    %1043 = vmatprep.subr.mxu0 0.0
    %1044 = vmatpush1.msra.mxu0 0.0
    %1045 = vmatprep.subr.mxu0 0.0
    %1046 = vmatpush1.msra.mxu0 0.0
    %1047 = vmatprep.subr.mxu0 0.0
    %1048 = vmatpush1.msra.mxu0 0.0
    %1049 = vmatprep.subr.mxu0 0.0
    %1050 = vmatpush1.msra.mxu0 0.0
    %1051 = vmatprep.subr.mxu0 0.0
    %1052 = vmatpush1.msra.mxu0 0.0
    %1053 = vmatprep.subr.mxu0 0.0
    %1054 = vmatpush1.msra.mxu0 0.0
    %1055 = vmatprep.subr.mxu0 0.0
    %1056 = vmatpush1.msra.mxu0 0.0
    %1057 = vmatprep.subr.mxu0 0.0
    %1058 = vmatpush1.msra.mxu0 0.0
    %1059 = vmatprep.subr.mxu0 0.0
    %1060 = vmatpush1.msra.mxu0 0.0
    %1061 = vmatprep.subr.mxu0 0.0
    %1062 = vmatpush1.msra.mxu0 0.0
    %1063 = vmatprep.subr.mxu0 0.0
    %1064 = vmatpush1.msra.mxu0 0.0
    %1065 = vmatprep.subr.mxu0 0.0
    %1066 = vmatpush1.msra.mxu0 0.0
    %1067 = vmatprep.subr.mxu0 0.0
    %1068 = vmatpush1.msra.mxu0 0.0
    %1069 = vmatprep.subr.mxu0 0.0
    %1070 = vmatpush1.msra.mxu0 0.0
    %1071 = vmatprep.mubr.f32.mxu0 0.0
    %1072 = vmatmul.mubr.f32.gmra.mrb[0].mxu0 %v1005
    %v1073 = vpop.f32.mrb[0].mxu0
    %v1074 = vadd.f32 0.0, %v1073
    %v1075 = vpop.f32.mrb[0].mxu0
    %1076 = vdwg.mxu0
    %v1078 = vrot.slane %v1074, 1
    %v1079 = vrot.slane %v1074, 2
    %v1082 = vadd.f32 %v111, %v1078
    %v1083 = vadd.f32 %v116, %v1079
    %v1084 = vxor.u32 %v1082, 2147483648
    %v1085 = vxor.u32 %v1083, 2147483648
    %v1086 = vmul.f32 %v1084, 1.442695
    %v1087 = vpow.pop %v1086
    %v1088 = vmul.f32 %v1085, 1.442695
    %v1089 = vpow.pop %v1088
    %v1090 = vadd.f32 %v1087, 1.0
    %v1091 = vadd.f32 %v1089, 1.0
    %v1092 = vrcp.pop %v1090
    %v1093 = vmul.f32 1.0, %v1092
    %v1094 = vrcp.pop %v1091
    %v1095 = vmul.f32 1.0, %v1094
    %v1096 = vtanh.pop %v1082
    %v1097 = vtanh.pop %v1083
    %v1100 = vrot.slane %v984, 7
    %v1101 = vrot.slane %v985, 7
    %v1104 = vmul.f32 %v1093, %v1100
    %v1105 = vmul.f32 %v1095, %v1101
    %1108 = vrot.lane.b32.xlu0 %v1096, 32
    %v1109 = vpop.permute.xlu0 %1108
    %1110 = vrot.lane.b32.xlu0 %v1097, 32
    %v1111 = vpop.permute.xlu0 %1110
    %v1114 = vmul.f32 %v1093, %v1109
    %v1115 = vmul.f32 %v1095, %v1111
    %1118 = vrot.lane.b32.xlu0 %v1114, 32
    %v1119 = vpop.permute.xlu0 %1118
    %1120 = vrot.lane.b32.xlu0 %v1115, 32
    %v1121 = vpop.permute.xlu0 %1120
    %v1124 = vadd.f32 %v1104, %v1119
    %v1125 = vadd.f32 %v1105, %v1121
    %v1126 = vtanh.pop %v1124
    %v1127 = vtanh.pop %v1125
    %1130 = vrot.lane.b32.xlu0 %v1126, 32
    %v1131 = vpop.permute.xlu0 %1130
    %1132 = vrot.lane.b32.xlu0 %v1127, 32
    %v1133 = vpop.permute.xlu0 %1132
    %v1136 = vmul.f32 %v1093, %v1131
    %v1137 = vmul.f32 %v1095, %v1133
    %v1138 = vld [vmem:[%s3] sm:$0xff]
    %v1139 = vld [vmem:[%s3 + $0x8] sm:$0xff]
    %v1140 = vld [vmem:[%s3 + $0x10] sm:$0xff]
    %v1141 = vld [vmem:[%s3 + $0x18] sm:$0xff]
    %v1142 = vld [vmem:[%s3 + $0x20] sm:$0x1]
    %v1143 = vlaneseq
    %v1144 = vshrl.u32 %v1143, 7
    %v1145 = vsub.s32 0, %v1144
    %v1146 = vrot.slane %v1142, %v1145
    %v1149 = vrot.slane %v1136, 7
    %v1150 = vrot.slane %v1137, 6
    %v1151 = vsel %vm158, %v1150, %v1149
    %1152 = vrot.lane.b32.xlu0 %v1151, 64
    %v1153 = vpop.permute.xlu0 %1152
    %v1154 = vsel %vm162, %v1153, 0
    %1156 = vmatprep.subr.mxu0 0.0
    %1157 = vmatpush1.msra.mxu0 %v1138
    %1158 = vmatprep.subr.mxu0 0.0
    %1159 = vmatpush1.msra.mxu0 %v1139
    %1160 = vmatprep.subr.mxu0 0.0
    %1161 = vmatpush1.msra.mxu0 %v1140
    %1162 = vmatprep.subr.mxu0 0.0
    %1163 = vmatpush1.msra.mxu0 %v1141
    %1164 = vmatprep.subr.mxu0 0.0
    %1165 = vmatpush1.msra.mxu0 0.0
    %1166 = vmatprep.subr.mxu0 0.0
    %1167 = vmatpush1.msra.mxu0 0.0
    %1168 = vmatprep.subr.mxu0 0.0
    %1169 = vmatpush1.msra.mxu0 0.0
    %1170 = vmatprep.subr.mxu0 0.0
    %1171 = vmatpush1.msra.mxu0 0.0
    %1172 = vmatprep.subr.mxu0 0.0
    %1173 = vmatpush1.msra.mxu0 0.0
    %1174 = vmatprep.subr.mxu0 0.0
    %1175 = vmatpush1.msra.mxu0 0.0
    %1176 = vmatprep.subr.mxu0 0.0
    %1177 = vmatpush1.msra.mxu0 0.0
    %1178 = vmatprep.subr.mxu0 0.0
    %1179 = vmatpush1.msra.mxu0 0.0
    %1180 = vmatprep.subr.mxu0 0.0
    %1181 = vmatpush1.msra.mxu0 0.0
    %1182 = vmatprep.subr.mxu0 0.0
    %1183 = vmatpush1.msra.mxu0 0.0
    %1184 = vmatprep.subr.mxu0 0.0
    %1185 = vmatpush1.msra.mxu0 0.0
    %1186 = vmatprep.subr.mxu0 0.0
    %1187 = vmatpush1.msra.mxu0 0.0
    %1188 = vmatprep.subr.mxu0 0.0
    %1189 = vmatpush1.msra.mxu0 0.0
    %1190 = vmatprep.subr.mxu0 0.0
    %1191 = vmatpush1.msra.mxu0 0.0
    %1192 = vmatprep.subr.mxu0 0.0
    %1193 = vmatpush1.msra.mxu0 0.0
    %1194 = vmatprep.subr.mxu0 0.0
    %1195 = vmatpush1.msra.mxu0 0.0
    %1196 = vmatprep.subr.mxu0 0.0
    %1197 = vmatpush1.msra.mxu0 0.0
    %1198 = vmatprep.subr.mxu0 0.0
    %1199 = vmatpush1.msra.mxu0 0.0
    %1200 = vmatprep.subr.mxu0 0.0
    %1201 = vmatpush1.msra.mxu0 0.0
    %1202 = vmatprep.subr.mxu0 0.0
    %1203 = vmatpush1.msra.mxu0 0.0
    %1204 = vmatprep.subr.mxu0 0.0
    %1205 = vmatpush1.msra.mxu0 0.0
    %1206 = vmatprep.subr.mxu0 0.0
    %1207 = vmatpush1.msra.mxu0 0.0
    %1208 = vmatprep.subr.mxu0 0.0
    %1209 = vmatpush1.msra.mxu0 0.0
    %1210 = vmatprep.subr.mxu0 0.0
    %1211 = vmatpush1.msra.mxu0 0.0
    %1212 = vmatprep.subr.mxu0 0.0
    %1213 = vmatpush1.msra.mxu0 0.0
    %1214 = vmatprep.subr.mxu0 0.0
    %1215 = vmatpush1.msra.mxu0 0.0
    %1216 = vmatprep.subr.mxu0 0.0
    %1217 = vmatpush1.msra.mxu0 0.0
    %1218 = vmatprep.subr.mxu0 0.0
    %1219 = vmatpush1.msra.mxu0 0.0
    %1220 = vmatprep.mubr.f32.mxu0 0.0
    %1221 = vmatmul.mubr.f32.gmra.mrb[0].mxu0 %v1154
    %v1222 = vpop.f32.mrb[0].mxu0
    %v1223 = vadd.f32 %v1146, %v1222
    %v1224 = vpop.f32.mrb[0].mxu0
    %1225 = vdwg.mxu0
    %v1226 = vld [vmem:[%s2] sm:$0xff]
    %v1227 = vld [vmem:[%s2 + $0x8] sm:$0xff]
    %v1228 = vld [vmem:[%s2 + $0x10] sm:$0xff]
    %v1229 = vld [vmem:[%s2 + $0x18] sm:$0xff]
    %vm1230 = vcmask 130048
    %v1232 = vsel %vm1230, %v1223, 0
    %1234 = vmatprep.subr.mxu0 0.0
    %1235 = vmatpush1.msra.mxu0 %v1228
    %1236 = vmatprep.subr.mxu0 0.0
    %1237 = vmatpush1.msra.mxu0 %v1229
    %1238 = vmatprep.subr.mxu0 0.0
    %1239 = vmatpush1.msra.mxu0 0.0
    %1240 = vmatprep.subr.mxu0 0.0
    %1241 = vmatpush1.msra.mxu0 0.0
    %1242 = vmatprep.subr.mxu0 0.0
    %1243 = vmatpush1.msra.mxu0 0.0
    %1244 = vmatprep.subr.mxu0 0.0
    %1245 = vmatpush1.msra.mxu0 0.0
    %1246 = vmatprep.subr.mxu0 0.0
    %1247 = vmatpush1.msra.mxu0 0.0
    %1248 = vmatprep.subr.mxu0 0.0
    %1249 = vmatpush1.msra.mxu0 0.0
    %1250 = vmatprep.subr.mxu0 0.0
    %1251 = vmatpush1.msra.mxu0 0.0
    %1252 = vmatprep.subr.mxu0 0.0
    %1253 = vmatpush1.msra.mxu0 0.0
    %1254 = vmatprep.subr.mxu0 0.0
    %1255 = vmatpush1.msra.mxu0 0.0
    %1256 = vmatprep.subr.mxu0 0.0
    %1257 = vmatpush1.msra.mxu0 0.0
    %1258 = vmatprep.subr.mxu0 0.0
    %1259 = vmatpush1.msra.mxu0 0.0
    %1260 = vmatprep.subr.mxu0 0.0
    %1261 = vmatpush1.msra.mxu0 0.0
    %1262 = vmatprep.subr.mxu0 0.0
    %1263 = vmatpush1.msra.mxu0 0.0
    %1264 = vmatprep.subr.mxu0 0.0
    %1265 = vmatpush1.msra.mxu0 0.0
    %1266 = vmatprep.subr.mxu0 0.0
    %1267 = vmatpush1.msra.mxu0 0.0
    %1268 = vmatprep.subr.mxu0 0.0
    %1269 = vmatpush1.msra.mxu0 0.0
    %1270 = vmatprep.subr.mxu0 0.0
    %1271 = vmatpush1.msra.mxu0 0.0
    %1272 = vmatprep.subr.mxu0 0.0
    %1273 = vmatpush1.msra.mxu0 0.0
    %1274 = vmatprep.subr.mxu0 0.0
    %1275 = vmatpush1.msra.mxu0 0.0
    %1276 = vmatprep.subr.mxu0 0.0
    %1277 = vmatpush1.msra.mxu0 0.0
    %1278 = vmatprep.subr.mxu0 0.0
    %1279 = vmatpush1.msra.mxu0 0.0
    %1280 = vmatprep.subr.mxu0 0.0
    %1281 = vmatpush1.msra.mxu0 0.0
    %1282 = vmatprep.subr.mxu0 0.0
    %1283 = vmatpush1.msra.mxu0 0.0
    %1284 = vmatprep.subr.mxu0 0.0
    %1285 = vmatpush1.msra.mxu0 0.0
    %1286 = vmatprep.subr.mxu0 0.0
    %1287 = vmatpush1.msra.mxu0 0.0
    %1288 = vmatprep.subr.mxu0 0.0
    %1289 = vmatpush1.msra.mxu0 0.0
    %1290 = vmatprep.subr.mxu0 0.0
    %1291 = vmatpush1.msra.mxu0 0.0
    %1292 = vmatprep.subr.mxu0 0.0
    %1293 = vmatpush1.msra.mxu0 0.0
    %1294 = vmatprep.subr.mxu0 0.0
    %1295 = vmatpush1.msra.mxu0 0.0
    %1296 = vmatprep.subr.mxu0 0.0
    %1297 = vmatpush1.msra.mxu0 0.0
    %1298 = vmatprep.mubr.f32.mxu0 0.0
    %1299 = vmatmul.mubr.f32.gmra.mrb[0].mxu0 %v1232
    %v1300 = vpop.f32.mrb[0].mxu0
    %v1301 = vadd.f32 0.0, %v1300
    %v1302 = vpop.f32.mrb[0].mxu0
    %1303 = vdwg.mxu0
    %1305 = vset.pattern.permute.xlu0 0
    %1306 = vperm.xlu0 %1305, %v1301
    %v1307 = vpop.permute.xlu0 %1306
    %v1310 = vmul.f32 %v1307, %v161
    %v1311 = vadd.f32 %v1310, 0.0
    %1312 = vset.pattern.permute.xlu0 1
    %1313 = vperm.xlu0 %1312, %v1301
    %v1314 = vpop.permute.xlu0 %1313
    %v1317 = vmul.f32 %v1314, %v304
    %v1318 = vadd.f32 %v1311, %v1317
    %1319 = vset.pattern.permute.xlu0 2
    %1320 = vperm.xlu0 %1319, %v1301
    %v1321 = vpop.permute.xlu0 %1320
    %v1324 = vmul.f32 %v1321, %v444
    %v1325 = vadd.f32 %v1318, %v1324
    %1326 = vset.pattern.permute.xlu0 3
    %1327 = vperm.xlu0 %1326, %v1301
    %v1328 = vpop.permute.xlu0 %1327
    %v1331 = vmul.f32 %v1328, %v584
    %v1332 = vadd.f32 %v1325, %v1331
    %1333 = vset.pattern.permute.xlu0 4
    %1334 = vperm.xlu0 %1333, %v1301
    %v1335 = vpop.permute.xlu0 %1334
    %v1338 = vmul.f32 %v1335, %v724
    %v1339 = vadd.f32 %v1332, %v1338
    %1340 = vset.pattern.permute.xlu0 5
    %1341 = vperm.xlu0 %1340, %v1301
    %v1342 = vpop.permute.xlu0 %1341
    %v1345 = vmul.f32 %v1342, %v864
    %v1346 = vadd.f32 %v1339, %v1345
    %1347 = vset.pattern.permute.xlu0 6
    %1348 = vperm.xlu0 %1347, %v1301
    %v1349 = vpop.permute.xlu0 %1348
    %v1352 = vmul.f32 %v1349, %v1004
    %v1353 = vadd.f32 %v1346, %v1352
    %1354 = vset.pattern.permute.xlu0 7
    %1355 = vperm.xlu0 %1354, %v1301
    %v1356 = vpop.permute.xlu0 %1355
    %v1359 = vmul.f32 %v1356, %v1153
    %v1360 = vadd.f32 %v1353, %v1359
    %1361 = vset.pattern.permute.xlu0 8
    %1362 = vperm.xlu0 %1361, %v1301
    %v1363 = vpop.permute.xlu0 %1362
    %v1365 = vadd.f32 %v1360, %v1363
    %vm1366 = vcmask 254976
    %v1367 = vsel %vm1366, %v1365, -inf
    %1368 = vmax.xlane.f32.xlu0 %v1367
    %v1369 = vpop.xlane.xlu0 %1368
    %v1370 = vsub.f32 %v1365, %v1369
    %v1371 = vmul.f32 %v1370, 1.442695
    %v1372 = vpow.pop %v1371
    %v1373 = vsel %vm1366, %v1372, 0.0
    %1374 = vadd.xlane.f32.xlu0 %v1373
    %v1375 = vpop.xlane.xlu0 %1374
    %v1376 = vrcp.pop %v1375
    %v1377 = vmul.f32 %v1372, %v1376
    %v1378 = vmul.f32 %v1377, %v161
    %v1379 = vsel %vm1366, %v1378, 0.0
    %1380 = vadd.xlane.f32.xlu0 %v1379
    %v1381 = vpop.xlane.xlu0 %1380
    %v1382 = vlaneseq
    %v1383 = vshrl.u32 %v1382, 7
    %v1384 = vsub.s32 0, %v1383
    %v1385 = vrot.slane %v1226, %v1384
    %v1386 = vmul.f32 %v1381, %v1385
    %v1387 = vadd.f32 %v1386, 0.0
    %v1388 = vmul.f32 %v1377, %v304
    %v1389 = vsel %vm1366, %v1388, 0.0
    %1390 = vadd.xlane.f32.xlu0 %v1389
    %v1391 = vpop.xlane.xlu0 %1390
    %v1392 = vlaneseq
    %v1393 = vshrl.u32 %v1392, 7
    %v1394 = vsub.s32 1, %v1393
    %v1395 = vrot.slane %v1226, %v1394
    %v1396 = vmul.f32 %v1391, %v1395
    %v1397 = vadd.f32 %v1387, %v1396
    %v1398 = vmul.f32 %v1377, %v444
    %v1399 = vsel %vm1366, %v1398, 0.0
    %1400 = vadd.xlane.f32.xlu0 %v1399
    %v1401 = vpop.xlane.xlu0 %1400
    %v1402 = vlaneseq
    %v1403 = vshrl.u32 %v1402, 7
    %v1404 = vsub.s32 2, %v1403
    %v1405 = vrot.slane %v1226, %v1404
    %v1406 = vmul.f32 %v1401, %v1405
    %v1407 = vadd.f32 %v1397, %v1406
    %v1408 = vmul.f32 %v1377, %v584
    %v1409 = vsel %vm1366, %v1408, 0.0
    %1410 = vadd.xlane.f32.xlu0 %v1409
    %v1411 = vpop.xlane.xlu0 %1410
    %v1412 = vlaneseq
    %v1413 = vshrl.u32 %v1412, 7
    %v1414 = vsub.s32 3, %v1413
    %v1415 = vrot.slane %v1226, %v1414
    %v1416 = vmul.f32 %v1411, %v1415
    %v1417 = vadd.f32 %v1407, %v1416
    %v1418 = vmul.f32 %v1377, %v724
    %v1419 = vsel %vm1366, %v1418, 0.0
    %1420 = vadd.xlane.f32.xlu0 %v1419
    %v1421 = vpop.xlane.xlu0 %1420
    %v1422 = vlaneseq
    %v1423 = vshrl.u32 %v1422, 7
    %v1424 = vsub.s32 4, %v1423
    %v1425 = vrot.slane %v1226, %v1424
    %v1426 = vmul.f32 %v1421, %v1425
    %v1427 = vadd.f32 %v1417, %v1426
    %v1428 = vmul.f32 %v1377, %v864
    %v1429 = vsel %vm1366, %v1428, 0.0
    %1430 = vadd.xlane.f32.xlu0 %v1429
    %v1431 = vpop.xlane.xlu0 %1430
    %v1432 = vlaneseq
    %v1433 = vshrl.u32 %v1432, 7
    %v1434 = vsub.s32 5, %v1433
    %v1435 = vrot.slane %v1226, %v1434
    %v1436 = vmul.f32 %v1431, %v1435
    %v1437 = vadd.f32 %v1427, %v1436
    %v1438 = vmul.f32 %v1377, %v1004
    %v1439 = vsel %vm1366, %v1438, 0.0
    %1440 = vadd.xlane.f32.xlu0 %v1439
    %v1441 = vpop.xlane.xlu0 %1440
    %v1442 = vlaneseq
    %v1443 = vshrl.u32 %v1442, 7
    %v1444 = vsub.s32 6, %v1443
    %v1445 = vrot.slane %v1226, %v1444
    %v1446 = vmul.f32 %v1441, %v1445
    %v1447 = vadd.f32 %v1437, %v1446
    %v1448 = vmul.f32 %v1377, %v1153
    %v1449 = vsel %vm1366, %v1448, 0.0
    %1450 = vadd.xlane.f32.xlu0 %v1449
    %v1451 = vpop.xlane.xlu0 %1450
    %v1452 = vlaneseq
    %v1453 = vshrl.u32 %v1452, 7
    %v1454 = vsub.s32 7, %v1453
    %v1455 = vrot.slane %v1226, %v1454
    %v1456 = vmul.f32 %v1451, %v1455
    %v1457 = vadd.f32 %v1447, %v1456
    %v1458 = vlaneseq
    %v1459 = vshrl.u32 %v1458, 7
    %v1460 = vsub.s32 0, %v1459
    %v1461 = vrot.slane %v1227, %v1460
    %v1462 = vadd.f32 %v1457, %v1461
    %v1463 = vld [vmem:[%s4] sm:$0xff]
    %v1464 = vld [vmem:[%s4 + $0x8] sm:$0xff]
    %v1465 = vld [vmem:[%s4 + $0x10] sm:$0xff]
    %v1466 = vld [vmem:[%s4 + $0x18] sm:$0xff]
    %v1467 = vld [vmem:[%s4 + $0x20] sm:$0xff]
    %v1468 = vld [vmem:[%s4 + $0x28] sm:$0xff]
    %v1469 = vld [vmem:[%s4 + $0x30] sm:$0x1]
    %v1471 = vsel %vm1230, %v1462, 0
    %1473 = vmatprep.subr.mxu0 0.0
    %1474 = vmatpush1.msra.mxu0 %v1467
    %1475 = vmatprep.subr.mxu0 0.0
    %1476 = vmatpush1.msra.mxu0 %v1468
    %1477 = vmatprep.subr.mxu0 0.0
    %1478 = vmatpush1.msra.mxu0 0.0
    %1479 = vmatprep.subr.mxu0 0.0
    %1480 = vmatpush1.msra.mxu0 0.0
    %1481 = vmatprep.subr.mxu0 0.0
    %1482 = vmatpush1.msra.mxu0 0.0
    %1483 = vmatprep.subr.mxu0 0.0
    %1484 = vmatpush1.msra.mxu0 0.0
    %1485 = vmatprep.subr.mxu0 0.0
    %1486 = vmatpush1.msra.mxu0 0.0
    %1487 = vmatprep.subr.mxu0 0.0
    %1488 = vmatpush1.msra.mxu0 0.0
    %1489 = vmatprep.subr.mxu0 0.0
    %1490 = vmatpush1.msra.mxu0 0.0
    %1491 = vmatprep.subr.mxu0 0.0
    %1492 = vmatpush1.msra.mxu0 0.0
    %1493 = vmatprep.subr.mxu0 0.0
    %1494 = vmatpush1.msra.mxu0 0.0
    %1495 = vmatprep.subr.mxu0 0.0
    %1496 = vmatpush1.msra.mxu0 0.0
    %1497 = vmatprep.subr.mxu0 0.0
    %1498 = vmatpush1.msra.mxu0 0.0
    %1499 = vmatprep.subr.mxu0 0.0
    %1500 = vmatpush1.msra.mxu0 0.0
    %1501 = vmatprep.subr.mxu0 0.0
    %1502 = vmatpush1.msra.mxu0 0.0
    %1503 = vmatprep.subr.mxu0 0.0
    %1504 = vmatpush1.msra.mxu0 0.0
    %1505 = vmatprep.subr.mxu0 0.0
    %1506 = vmatpush1.msra.mxu0 0.0
    %1507 = vmatprep.subr.mxu0 0.0
    %1508 = vmatpush1.msra.mxu0 0.0
    %1509 = vmatprep.subr.mxu0 0.0
    %1510 = vmatpush1.msra.mxu0 0.0
    %1511 = vmatprep.subr.mxu0 0.0
    %1512 = vmatpush1.msra.mxu0 0.0
    %1513 = vmatprep.subr.mxu0 0.0
    %1514 = vmatpush1.msra.mxu0 0.0
    %1515 = vmatprep.subr.mxu0 0.0
    %1516 = vmatpush1.msra.mxu0 0.0
    %1517 = vmatprep.subr.mxu0 0.0
    %1518 = vmatpush1.msra.mxu0 0.0
    %1519 = vmatprep.subr.mxu0 0.0
    %1520 = vmatpush1.msra.mxu0 0.0
    %1521 = vmatprep.subr.mxu0 0.0
    %1522 = vmatpush1.msra.mxu0 0.0
    %1523 = vmatprep.subr.mxu0 0.0
    %1524 = vmatpush1.msra.mxu0 0.0
    %1525 = vmatprep.subr.mxu0 0.0
    %1526 = vmatpush1.msra.mxu0 0.0
    %1527 = vmatprep.subr.mxu0 0.0
    %1528 = vmatpush1.msra.mxu0 0.0
    %1529 = vmatprep.subr.mxu0 0.0
    %1530 = vmatpush1.msra.mxu0 0.0
    %1531 = vmatprep.subr.mxu0 0.0
    %1532 = vmatpush1.msra.mxu0 0.0
    %1533 = vmatprep.subr.mxu0 0.0
    %1534 = vmatpush1.msra.mxu0 0.0
    %1535 = vmatprep.subr.mxu0 0.0
    %1536 = vmatpush1.msra.mxu0 0.0
    %1537 = vmatprep.mubr.f32.mxu0 0.0
    %1538 = vmatmul.mubr.f32.gmra.mrb[0].mxu0 %v1471
    %v1539 = vpop.f32.mrb[0].mxu0
    %v1540 = vadd.f32 0.0, %v1539
    %v1541 = vpop.f32.mrb[0].mxu0
    %1542 = vdwg.mxu0
    %1543 = vmatprep.subr.mxu0 0.0
    %1544 = vmatpush1.msra.mxu0 %v1463
    %1545 = vmatprep.subr.mxu0 0.0
    %1546 = vmatpush1.msra.mxu0 %v1464
    %1547 = vmatprep.subr.mxu0 0.0
    %1548 = vmatpush1.msra.mxu0 %v1465
    %1549 = vmatprep.subr.mxu0 0.0
    %1550 = vmatpush1.msra.mxu0 %v1466
    %1551 = vmatprep.subr.mxu0 0.0
    %1552 = vmatpush1.msra.mxu0 0.0
    %1553 = vmatprep.subr.mxu0 0.0
    %1554 = vmatpush1.msra.mxu0 0.0
    %1555 = vmatprep.subr.mxu0 0.0
    %1556 = vmatpush1.msra.mxu0 0.0
    %1557 = vmatprep.subr.mxu0 0.0
    %1558 = vmatpush1.msra.mxu0 0.0
    %1559 = vmatprep.subr.mxu0 0.0
    %1560 = vmatpush1.msra.mxu0 0.0
    %1561 = vmatprep.subr.mxu0 0.0
    %1562 = vmatpush1.msra.mxu0 0.0
    %1563 = vmatprep.subr.mxu0 0.0
    %1564 = vmatpush1.msra.mxu0 0.0
    %1565 = vmatprep.subr.mxu0 0.0
    %1566 = vmatpush1.msra.mxu0 0.0
    %1567 = vmatprep.subr.mxu0 0.0
    %1568 = vmatpush1.msra.mxu0 0.0
    %1569 = vmatprep.subr.mxu0 0.0
    %1570 = vmatpush1.msra.mxu0 0.0
    %1571 = vmatprep.subr.mxu0 0.0
    %1572 = vmatpush1.msra.mxu0 0.0
    %1573 = vmatprep.subr.mxu0 0.0
    %1574 = vmatpush1.msra.mxu0 0.0
    %1575 = vmatprep.subr.mxu0 0.0
    %1576 = vmatpush1.msra.mxu0 0.0
    %1577 = vmatprep.subr.mxu0 0.0
    %1578 = vmatpush1.msra.mxu0 0.0
    %1579 = vmatprep.subr.mxu0 0.0
    %1580 = vmatpush1.msra.mxu0 0.0
    %1581 = vmatprep.subr.mxu0 0.0
    %1582 = vmatpush1.msra.mxu0 0.0
    %1583 = vmatprep.subr.mxu0 0.0
    %1584 = vmatpush1.msra.mxu0 0.0
    %1585 = vmatprep.subr.mxu0 0.0
    %1586 = vmatpush1.msra.mxu0 0.0
    %1587 = vmatprep.subr.mxu0 0.0
    %1588 = vmatpush1.msra.mxu0 0.0
    %1589 = vmatprep.subr.mxu0 0.0
    %1590 = vmatpush1.msra.mxu0 0.0
    %1591 = vmatprep.subr.mxu0 0.0
    %1592 = vmatpush1.msra.mxu0 0.0
    %1593 = vmatprep.subr.mxu0 0.0
    %1594 = vmatpush1.msra.mxu0 0.0
    %1595 = vmatprep.subr.mxu0 0.0
    %1596 = vmatpush1.msra.mxu0 0.0
    %1597 = vmatprep.subr.mxu0 0.0
    %1598 = vmatpush1.msra.mxu0 0.0
    %1599 = vmatprep.subr.mxu0 0.0
    %1600 = vmatpush1.msra.mxu0 0.0
    %1601 = vmatprep.subr.mxu0 0.0
    %1602 = vmatpush1.msra.mxu0 0.0
    %1603 = vmatprep.subr.mxu0 0.0
    %1604 = vmatpush1.msra.mxu0 0.0
    %1605 = vmatprep.subr.mxu0 0.0
    %1606 = vmatpush1.msra.mxu0 0.0
    %1607 = vmatprep.mubr.f32.mxu0 0.0
    %1608 = vmatmul.mubr.f32.gmra.mrb[0].mxu0 %v1154
    %v1609 = vpop.f32.mrb[0].mxu0
    %v1610 = vadd.f32 %v1540, %v1609
    %v1611 = vpop.f32.mrb[0].mxu0
    %1612 = vdwg.mxu0
    %v1613 = vlaneseq
    %v1614 = vshrl.u32 %v1613, 7
    %v1615 = vsub.s32 0, %v1614
    %v1616 = vrot.slane %v1469, %v1615
    %v1617 = vadd.f32 %v1610, %v1616
    %vm1618 = vcmask 25600
    %1619 = vst.msk [vmem:[#allocation2] sm:$0x3] %vm1618, %v1617
    // Predicated region
    $region22: #{tpu_custom_call.1} parent=1 // pred_check
      _
    $region23: #{tpu_custom_call.1} parent=1 // pred_check_branch
      %1621 = sbr.rel (0) target = $region25
    $region24: #{tpu_custom_call.1} parent=1 // pred_region
      %s1623 = ssub.s32 32, 32
      %1624 = vsyncadd [#allocation3], %s1623
      %s1626 = sshll.u32 [#allocation2], 4
      %s1627 = int_to_ptr.vmem [resolvable:$true] %s1626
      %1629 = dma.vmem_to_hbm [thread:$0]  %s1627, 32, %s5, [#allocation3]
    $region25: #{tpu_custom_call.1} parent=1 // pred_fallthru
      _
    // Predicated region
    $region26: #{tpu_custom_call.1} parent=1 // pred_check
      _
    $region27: #{tpu_custom_call.1} parent=1 // pred_check_branch
      %1631 = sbr.rel (0) target = $region29
    $region28: #{tpu_custom_call.1} parent=1 // pred_region
      %1632 = dma.done [#allocation3], 32
    $region29: #{tpu_custom_call.1} parent=1 // pred_fallthru
      _
    %1633 = vsyncpa [#allocation3], 1

</llo_original>
